<compile_context>
chip_gen: v5e
topology: v5e:2x2
jax: 0.10.0
libtpu: 0.0.40
codegen_flags: <defaults>
</compile_context>

<pallas_src>
import functools

import jax
import jax.numpy as jnp
from jax import lax
from jax.experimental import pallas as pl
from jax.experimental.pallas import tpu as pltpu


def _force_pair(v):
    if isinstance(v, (tuple, list)):
        assert len(v) == 2
        return (int(v[0]), int(v[1]))
    return (int(v), int(v))


def _cdiv(a, b):
    return -(-a // b)


def _round_up(x, m):
    return _cdiv(x, m) * m


def _padded_block_bytes(shape, dtype):
    """Rough VMEM footprint of a block after (sublane, lane) tile padding."""
    itemsize = jnp.dtype(dtype).itemsize
    dims = list(shape)
    if len(dims) >= 1:
        dims[-1] = _round_up(dims[-1], 128)
    if len(dims) >= 2:
        sub = 8 * max(1, 4 // itemsize)          # 8 for 4B, 16 for 2B dtypes
        dims[-2] = _round_up(dims[-2], sub)
    n = 1
    for d in dims:
        n *= d
    return n * itemsize


@functools.lru_cache(maxsize=1)
def _vmem_budget_bytes():
    """Per-generation scoped-VMEM ceiling (leave headroom below physical)."""
    phys = 128 * 2**20
    try:
        info = pltpu.get_tpu_info()
        v = getattr(info, "vmem_capacity_bytes", None)
        if v:
            phys = int(v)
    except Exception:
        pass
    if phys <= 64 * 2**20:
        return 52 * 2**20                    # v7x: 64 MiB physical per TC
    return min(100 * 2**20, int(phys * 0.8))  # v5e/v6e: 128 MiB physical


def _conv_transpose_phase_kernel(x_ref, w_ref, o_ref, *, kph, kpw):
    """One (batch, row-tile) grid step.

    x_ref : [Hp, Wp, Cin]        haloed, un-dilated input (resident across
                                 the row-tile axis).
    w_ref : [kph*kpw*Cin, Nph]   flipped per-phase sub-kernels stacked along
                                 the contraction dim (resident).
    o_ref : [TQ, Qw, Nph]        all s_h*s_w output phases for TQ pre-stride
                                 rows; Nph is a multiple of 128 and Qw a
                                 sublane multiple -> unmasked stores.
    """
    tqh, qw, _ = o_ref.shape
    row0 = pl.program_id(1) * tqh
    if tqh % 8 == 0:
        row0 = pl.multiple_of(row0, 8)

    # Hoisted column shifts: only kpw sublane relayouts per step; the per-tap
    # row shifts below are free static slices of these materialized columns.
    cols = [x_ref[pl.ds(row0, tqh + kph - 1), pl.ds(mw, qw), :]
            for mw in range(kpw)]

    patches = []
    for mh in range(kph):
        for mw in range(kpw):
            patches.append(cols[mw][mh:mh + tqh])          # (TQ, Qw, Cin)

    # Single K-stacked MXU matmul (K = kph*kpw*Cin): tap accumulation happens
    # inside the MXU instead of as VPU adds on a spilled f32 accumulator.
    big = patches[0] if len(patches) == 1 else jnp.concatenate(patches, axis=-1)
    acc = lax.dot_general(
        big, w_ref[...],
        dimension_numbers=(((2,), (0,)), ((), ())),
        preferred_element_type=jnp.float32)
    o_ref[...] = acc.astype(o_ref.dtype)


@functools.partial(
    jax.jit,
    static_argnames=("sh", "sw", "ph", "pw", "row_tile", "compute_dtype"))
def _conv_transpose2d_impl(x, weight, *, sh, sw, ph, pw, row_tile, compute_dtype):
    B, Cin, H, W = x.shape
    Cin_w, Cout, KH, KW = weight.shape
    assert Cin == Cin_w
    assert ph >= 0 and pw >= 0
    OH = (H - 1) * sh - 2 * ph + KH
    OW = (W - 1) * sw - 2 * pw + KW
    assert OH > 0 and OW > 0

    kph = _cdiv(KH, sh)                 # taps per phase (kernel zero-padded up)
    kpw = _cdiv(KW, sw)
    qh = H + kph - 1                    # per-phase (pre-stride) output rows
    qw = W + kpw - 1
    nph = sh * sw * Cout                # phases folded into matmul N dim

    # Lane-dense output (cropped in epilogue) + sublane-aligned columns.
    nph_pad = _round_up(nph, 128)
    qw_pad = _round_up(qw, 8)
    k_stack = kph * kpw * Cin
    out_dtype = x.dtype
    budget = _vmem_budget_bytes()

    def _footprint(tq):
        gh_ = _cdiv(qh, tq)
        hp_ = gh_ * tq + kph - 1
        wp_ = qw_pad + kpw - 1
        return (2 * _padded_block_bytes((hp_, wp_, Cin), compute_dtype)         # image (dbl-buf)
                + 2 * _padded_block_bytes((k_stack, nph_pad), compute_dtype)    # weight (dbl-buf)
                + 2 * _padded_block_bytes((tq, qw_pad, nph_pad), out_dtype)     # out (dbl-buf)
                + _padded_block_bytes((tq, qw_pad, nph_pad), jnp.float32)       # f32 matmul result
                + _padded_block_bytes((tq + kph - 1, qw_pad, k_stack),
                                      compute_dtype))                           # K-stacked patches

    if row_tile is not None:
        tqh = max(1, min(int(row_tile), _round_up(qh, 8)))
    else:
        tqh_cap = _round_up(qh, 8)
        if B == 1 and qh > 8:
            # Keep >= 2 row tiles so both v7x TensorCores get work.
            tqh_cap = min(tqh_cap, _round_up(_cdiv(qh, 2), 8))
        tqh = min(8, tqh_cap)
        for cand in (256, 192, 128, 96, 64, 48, 32, 24, 16, 8):
            c = max(1, min(cand, tqh_cap))
            if _footprint(c) <= int(0.7 * budget):
                tqh = c
                break

    gh = _cdiv(qh, tqh)
    qh_pad = gh * tqh                    # pad rows so every tile is full
    vmem_limit = int(min(budget, max(32 * 2**20, int(1.25 * _footprint(tqh)))))

    # ---- input: NHWC, halo of (kp-1), bf16 for the MXU (halves input DMA) ----
    # NOTE: for tiny Cin (<= 32) the VMEM image block is mostly lane padding and
    # this layer is relayout/overhead-bound rather than FLOP-bound.
    x_nhwc = jnp.transpose(x, (0, 2, 3, 1)).astype(compute_dtype)
    x_hal = jnp.pad(
        x_nhwc,
        ((0, 0),
         (kph - 1, kph - 1 + (qh_pad - qh)),
         (kpw - 1, kpw - 1 + (qw_pad - qw)),
         (0, 0)))
    hp, wp = x_hal.shape[1], x_hal.shape[2]

    # ---- weight: flipped per-phase sub-kernels, K-stacked  [kph*kpw*Cin, nph_pad]
    # w_mat[(mh*kpw+mw)*Cin+ci, (rh*sw+rw)*Cout+co]
    #   = w[ci, co, rh + sh*(kph-1-mh), rw + sw*(kpw-1-mw)]
    w_pad = jnp.pad(weight, ((0, 0), (0, 0),
                             (0, kph * sh - KH), (0, kpw * sw - KW)))
    w_r = w_pad.reshape(Cin, Cout, kph, sh, kpw, sw)
    w_f = w_r[:, :, ::-1, :, ::-1, :]
    w_mat = jnp.transpose(w_f, (2, 4, 0, 3, 5, 1)).reshape(k_stack, nph)
    w_mat = jnp.pad(w_mat, ((0, 0), (0, nph_pad - nph))).astype(compute_dtype)

    kernel = functools.partial(_conv_transpose_phase_kernel, kph=kph, kpw=kpw)

    out_k = pl.pallas_call(
        kernel,
        out_shape=jax.ShapeDtypeStruct((B, qh_pad, qw_pad, nph_pad), out_dtype),
        grid_spec=pltpu.PrefetchScalarGridSpec(
            num_scalar_prefetch=0,
            grid=(B, gh),
            in_specs=[
                # Whole haloed image per batch element; block index constant
                # along the row-tile axis -> DMA'd once, revisited for free.
                pl.BlockSpec((None, hp, wp, Cin), lambda b, t: (b, 0, 0, 0)),
                # Resident K-stacked weight.
                pl.BlockSpec((k_stack, nph_pad), lambda b, t: (0, 0)),
            ],
            out_specs=pl.BlockSpec((None, tqh, qw_pad, nph_pad),
                                   lambda b, t: (b, t, 0, 0)),
        ),
        compiler_params=pltpu.CompilerParams(
            dimension_semantics=("parallel", "parallel"),
            vmem_limit_bytes=vmem_limit,
        ),
    )(x_hal, w_mat)

    # ---- crop pads, un-interleave phases, back to NCHW (layout only, fused) ----
    y = out_k[:, :, :qw, :nph]
    y = y.reshape(B, qh_pad, qw, sh, sw, Cout)
    y = jnp.transpose(y, (0, 1, 3, 2, 4, 5)).reshape(B, qh_pad * sh, qw * sw, Cout)
    y = y[:, ph:ph + OH, pw:pw + OW, :]
    return jnp.transpose(y, (0, 3, 1, 2))


def conv_transpose2d(x, weight, stride=1, padding=0, *, row_tile=None,
                     compute_dtype=jnp.bfloat16):
    """torch.nn.functional.conv_transpose2d(x, weight, stride, padding), bias=False.

    x      : [B, Cin, H, W]      (NCHW, like PyTorch)
    weight : [Cin, Cout, KH, KW] (like nn.ConvTranspose2d.weight)
    returns: [B, Cout, OH, OW]
    """
    sh, sw = _force_pair(stride)
    ph, pw = _force_pair(padding)
    rt = None if row_tile is None else int(row_tile)
    return _conv_transpose2d_impl(x, weight, sh=sh, sw=sw, ph=ph, pw=pw,
                                  row_tile=rt, compute_dtype=compute_dtype)


class ConvTranspose2d:
    """Same as torch.nn.ConvTranspose2d with bias=False (forward only)."""

    def __init__(self, in_channels, out_channels, kernel_size, stride=1,
                 padding=0, *, key):
        self.in_channels = in_channels
        self.out_channels = out_channels
        self.kernel_size = kernel_size
        self.stride = stride
        self.padding = padding
        kh, kw = _force_pair(kernel_size)
        sf = 1.0 / (out_channels * kh * kw) ** 0.5
        u = jax.random.uniform(key, (in_channels, out_channels, kh, kw),
                               dtype=jnp.float32)
        self.weight = sf * (2.0 * u - 1.0)

    def __call__(self, x):
        return conv_transpose2d(x, self.weight, self.stride, self.padding)


def _reference_conv_transpose2d(x, weight, stride, padding):
    """Pure-JAX reference (no Pallas) for correctness check."""
    sh, sw = _force_pair(stride)
    ph, pw = _force_pair(padding)
    Cin, Cout, KH, KW = weight.shape
    w_flipped = jnp.transpose(weight[:, :, ::-1, ::-1], (1, 0, 2, 3))  # OIHW
    return lax.conv_general_dilated(
        x, w_flipped,
        window_strides=(1, 1),
        padding=[(KH - 1 - ph, KH - 1 - ph), (KW - 1 - pw, KW - 1 - pw)],
        lhs_dilation=(sh, sw),
        dimension_numbers=("NCHW", "OIHW", "NCHW"),
    )


if __name__ == "__main__":
    key = jax.random.PRNGKey(0)

    def check(B, Cin, Cout, H, W, K, stride, padding, *, row_tile=None, tag=0):
        kx, kw2 = jax.random.split(jax.random.fold_in(key, tag))
        x = jax.random.normal(kx, (B, Cin, H, W), dtype=jnp.float32)
        mod = ConvTranspose2d(Cin, Cout, K, stride=stride, padding=padding, key=kw2)
        y = conv_transpose2d(x, mod.weight, stride, padding, row_tile=row_tile)
        y = jax.block_until_ready(y)

        sh, sw = _force_pair(stride)
        ph, pw = _force_pair(padding)
        kh, kw_ = _force_pair(K)
        OH = (H - 1) * sh - 2 * ph + kh
        OW = (W - 1) * sw - 2 * pw + kw_
        assert y.shape == (B, Cout, OH, OW), (y.shape, (B, Cout, OH, OW))

        # Reference with operands pre-cast to bf16, matching the MXU operand
        # precision of the kernel (f32 accumulation in both).
        xr = x.astype(jnp.bfloat16).astype(jnp.float32)
        wr = mod.weight.astype(jnp.bfloat16).astype(jnp.float32)
        y_ref = _reference_conv_transpose2d(xr, wr, stride, padding)
        err = float(jnp.max(jnp.abs(y - y_ref)))
        assert jnp.allclose(y, y_ref, atol=2e-2, rtol=2e-2), err

    # DCGAN-style upsample 16x16 -> 32x32 (the module's typical use).
    check(2, 4, 8, 16, 16, 4, 2, 1, tag=0)
    # Same layer, multi-row-tile grid path (ragged last tile).
    check(2, 4, 8, 16, 16, 4, 2, 1, row_tile=8, tag=1)
    # Kernel not a multiple of stride (zero-padded phase taps), non-square.
    check(2, 3, 5, 9, 7, 3, 2, 1, tag=2)
    # stride=1 degenerate path (single phase per pixel).
    check(2, 3, 4, 6, 5, 3, 1, 1, tag=3)

    print("KERNEL_OK")
</pallas_src>

<mosaic_0001>
module attributes {stable_mosaic.version = 11 : i64} {
  func.func @_conv_transpose_phase_kernel(%arg0: i32, %arg1: i32, %arg2: memref<1x25x25x4xbf16, #tpu.memory_space<vmem>>, %arg3: memref<16x128xbf16, #tpu.memory_space<vmem>>, %arg4: memref<1x24x24x128xf32, #tpu.memory_space<vmem>>) attributes {dimension_semantics = [#tpu.dimension_semantics<parallel>, #tpu.dimension_semantics<parallel>], iteration_bounds = array<i64: 2, 1>, scalar_prefetch = 0 : i64, scratch_operands = 0 : i64, tpu.core_type = #tpu.core_type<tc>, window_params = [{transform_indices = @transform_0, window_bounds = array<i64: 1, 25, 25, 4>}, {pipeline_mode = #tpu.pipeline_mode<synchronous>, transform_indices = @transform_1, window_bounds = array<i64: 16, 128>}, {transform_indices = @transform_2, window_bounds = array<i64: 1, 24, 24, 128>}]} {
    %c24_i32 = arith.constant 24 : i32
    %0 = arith.muli %arg1, %c24_i32 : i32
    %1 = tpu.assume_multiple %0, 8 : i32
    %c0 = arith.constant 0 : index
    %2 = arith.index_cast %1 : i32 to index
    %c0_0 = arith.constant 0 : index
    %c0_1 = arith.constant 0 : index
    %3 = vector.load %arg2[%c0, %2, %c0_0, %c0_1] : memref<1x25x25x4xbf16, #tpu.memory_space<vmem>>, vector<1x25x24x4xbf16>
    %4 = vector.shape_cast %3 : vector<1x25x24x4xbf16> to vector<25x24x4xbf16>
    %c0_2 = arith.constant 0 : index
    %5 = arith.index_cast %1 : i32 to index
    %c1 = arith.constant 1 : index
    %c0_3 = arith.constant 0 : index
    %6 = vector.load %arg2[%c0_2, %5, %c1, %c0_3] : memref<1x25x25x4xbf16, #tpu.memory_space<vmem>>, vector<1x25x24x4xbf16>
    %7 = vector.shape_cast %6 : vector<1x25x24x4xbf16> to vector<25x24x4xbf16>
    %8 = vector.extract_strided_slice %4 {offsets = [0, 0, 0], sizes = [24, 24, 4], strides = [1, 1, 1]} : vector<25x24x4xbf16> to vector<24x24x4xbf16>
    %9 = vector.extract_strided_slice %7 {offsets = [0, 0, 0], sizes = [24, 24, 4], strides = [1, 1, 1]} : vector<25x24x4xbf16> to vector<24x24x4xbf16>
    %10 = vector.extract_strided_slice %4 {offsets = [1, 0, 0], sizes = [24, 24, 4], strides = [1, 1, 1]} : vector<25x24x4xbf16> to vector<24x24x4xbf16>
    %11 = vector.extract_strided_slice %7 {offsets = [1, 0, 0], sizes = [24, 24, 4], strides = [1, 1, 1]} : vector<25x24x4xbf16> to vector<24x24x4xbf16>
    %12 = tpu.concatenate %8, %9, %10, %11 in 2 : vector<24x24x4xbf16>, vector<24x24x4xbf16>, vector<24x24x4xbf16>, vector<24x24x4xbf16> -> vector<24x24x16xbf16>
    %c0_4 = arith.constant 0 : index
    %c0_5 = arith.constant 0 : index
    %13 = vector.load %arg3[%c0_4, %c0_5] : memref<16x128xbf16, #tpu.memory_space<vmem>>, vector<16x128xbf16>
    %cst = arith.constant dense<0.000000e+00> : vector<24x24x128xf32>
    %14 = tpu.matmul %12, %13, %cst {dimension_numbers = #tpu.dot_dimension_numbers<[2], [0], [0, 1], [1], [0, 0, 0, 1, 1, 1], [], []>} : vector<24x24x16xbf16>, vector<16x128xbf16>, vector<24x24x128xf32> -> vector<24x24x128xf32>
    %c0_6 = arith.constant 0 : index
    %c0_7 = arith.constant 0 : index
    %c0_8 = arith.constant 0 : index
    %c0_9 = arith.constant 0 : index
    %15 = vector.load %arg4[%c0_6, %c0_7, %c0_8, %c0_9] : memref<1x24x24x128xf32, #tpu.memory_space<vmem>>, vector<1x24x24x128xf32>
    %16 = vector.shape_cast %15 : vector<1x24x24x128xf32> to vector<24x24x128xf32>
    %17 = vector.shape_cast %14 : vector<24x24x128xf32> to vector<1x24x24x128xf32>
    tpu.vector_store %arg4[%c0_6, %c0_7, %c0_8, %c0_9], %17 {strides = array<i32>} : memref<1x24x24x128xf32, #tpu.memory_space<vmem>>, vector<1x24x24x128xf32>,
    return
  }
  func.func @transform_0(%arg0: i32, %arg1: i32) -> (i32, i32, i32, i32) {
    %c0_i32 = arith.constant 0 : i32
    %c0_i32_0 = arith.constant 0 : i32
    %c0_i32_1 = arith.constant 0 : i32
    %c0_i32_2 = arith.constant 0 : i32
    return %arg0, %c0_i32, %c0_i32_0, %c0_i32_1 : i32, i32, i32, i32
  }
  func.func @transform_1(%arg0: i32, %arg1: i32) -> (i32, i32) {
    %c0_i32 = arith.constant 0 : i32
    %c0_i32_0 = arith.constant 0 : i32
    %c0_i32_1 = arith.constant 0 : i32
    return %c0_i32, %c0_i32_0 : i32, i32
  }
  func.func @transform_2(%arg0: i32, %arg1: i32) -> (i32, i32, i32, i32) {
    %c0_i32 = arith.constant 0 : i32
    %c0_i32_0 = arith.constant 0 : i32
    %c0_i32_1 = arith.constant 0 : i32
    return %arg0, %arg1, %c0_i32, %c0_i32_0 : i32, i32, i32, i32
  }
}

</mosaic_0001>

<llo_original>
// kernel: _conv_transpose2d_impl.1
$region0: #{_conv_transpose2d_impl.1}
  #allocation0 [shape = 'u32[]', space=smem, size = 0x4, offset = 0x4, fixed_abs, tag = 'smem constant byte address 0x4 - core index']
  #allocation1 [shape = 'u32[72,128]{1,0:T(1,128)}', space=vmem, size = 0x9000, scoped, tag = 'internal scratch']
  %s0 = inlined_call_operand.vmem [shape: bf16[2,25,25,4], index: 0, kind: input, shape index: {}]
  %s1 = inlined_call_operand.vmem [shape: bf16[16,128], index: 1, kind: input, shape index: {}]
  %s2 = inlined_call_operand.vmem [shape: f32[2,24,24,128], index: 2, kind: output, shape index: {}]
  %s3 = sld [smem:[#allocation0]]
  $region41: #{_conv_transpose2d_impl.1} parent=0
    _
  %s5 = ssub.s32 1, %s3
  %s6 = scalar_select 0, %s5, %s3
  loop: start=0, step=1, limit=4
  $region2: #{_conv_transpose2d_impl.1} parent=0 // loop_pre_header
    _
  $region3: #{_conv_transpose2d_impl.1} parent=0 // loop_header
    %s8 = sphi 0, %s12
    %p9 = scmp.ge.s32.totalorder %s8, 4
    %s15 = sphi 0, %s27
    %s16 = sphi 0, %s23
    %s17 = sphi 0, %s15
    %s18 = sphi 0, %s16
    %s19 = sphi 0, %s17
    %s20 = sphi 0, %s18
    %s30 = sphi 0, %s32
    %s33 = sphi 0, %s30
    %s34 = sphi 0, %s33
    %s50 = sphi 0, %s34
    %s54 = sphi 0, %s54
    %s56 = sphi 0, %s54
    %s57 = sphi 0, %s56
    %s71 = sphi 0, %s57
    %s79 = sphi 0, %s81
    %s82 = sphi 0, %s79
    %s83 = sphi 0, %s82
    %s99 = sphi 0, %s83
  $region4: #{_conv_transpose2d_impl.1} parent=0 // loop_header_branch
    %11 = sbr.rel (%p9) target = $region8
  $region5: #{_conv_transpose2d_impl.1} parent=0 // loop_body
    %s13 = ssub.s32 %s8, 1
    %s14 = ssub.s32 %s8, 2
    %s21 = sadd.s32 1, %s16
    %p22 = scmp.ge.s32.totalorder %s21, 1
    %s23 = scalar_select %p22, 0, %s21
    %s24 = sadd.s32 1, %s15
    %s25 = scalar_select %p22, %s24, %s15
    %p26 = scmp.ge.s32.totalorder %s25, 2
    %s27 = scalar_select %p26, 0, %s25
    %s28 = ssub.s32 %s15, %s27
    %p29 = scmp.eq.s32.totalorder %s28, 0
    %s31 = sadd.s32 %s30, 1
    %s32 = scalar_select %p29, %s30, %s31
    %p35 = pneg %p29
    %p36 = scmp.eq.s32.totalorder %s8, 1
    %p37 = por %p35, %p36
    %p38 = scmp.ne.s32.totalorder %s30, %s33
    %p39 = scmp.eq.s32.totalorder %s8, 0
    %p40 = por %p38, %p39
    %p41 = scmp.ne.s32.totalorder %s30, %s33
    %p42 = scmp.eq.s32.totalorder %s13, 1
    %p43 = por %p41, %p42
    %p44 = scmp.ne.s32.totalorder %s33, %s34
    %p45 = scmp.eq.s32.totalorder %s13, 0
    %p46 = por %p44, %p45
    %p47 = scmp.ne.s32.totalorder %s33, %s34
    %p48 = scmp.eq.s32.totalorder %s14, 1
    %p49 = por %p47, %p48
    %p51 = scmp.ne.s32.totalorder %s34, %s50
    %p52 = scmp.eq.s32.totalorder %s14, 0
    %p53 = por %p51, %p52
    %s55 = sadd.s32 %s54, 1
    %p58 = scmp.eq.s32.totalorder %s8, 1
    %p59 = scmp.ne.s32.totalorder %s54, %s56
    %p60 = scmp.eq.s32.totalorder %s8, 0
    %p61 = por %p59, %p60
    %p62 = scmp.ne.s32.totalorder %s54, %s56
    %p63 = scmp.eq.s32.totalorder %s13, 1
    %p64 = por %p62, %p63
    %p65 = scmp.ne.s32.totalorder %s56, %s57
    %p66 = scmp.eq.s32.totalorder %s13, 0
    %p67 = por %p65, %p66
    %p68 = scmp.ne.s32.totalorder %s56, %s57
    %p69 = scmp.eq.s32.totalorder %s14, 1
    %p70 = por %p68, %p69
    %p72 = scmp.ne.s32.totalorder %s57, %s71
    %p73 = scmp.eq.s32.totalorder %s14, 0
    %p74 = por %p72, %p73
    %s75 = ssub.s32 %s15, %s27
    %s76 = ssub.s32 %s16, %s23
    %s77 = sor.u32 %s75, %s76
    %p78 = scmp.eq.s32.totalorder %s77, 0
    %s80 = sadd.s32 %s79, 1
    %s81 = scalar_select %p78, %s79, %s80
    %p84 = pneg %p78
    %p85 = scmp.eq.s32.totalorder %s8, 1
    %p86 = por %p84, %p85
    %p87 = scmp.ne.s32.totalorder %s79, %s82
    %p88 = scmp.eq.s32.totalorder %s8, 0
    %p89 = por %p87, %p88
    %p90 = scmp.ne.s32.totalorder %s79, %s82
    %p91 = scmp.eq.s32.totalorder %s13, 1
    %p92 = por %p90, %p91
    %p93 = scmp.ne.s32.totalorder %s82, %s83
    %p94 = scmp.eq.s32.totalorder %s13, 0
    %p95 = por %p93, %p94
    %p96 = scmp.ne.s32.totalorder %s82, %s83
    %p97 = scmp.eq.s32.totalorder %s14, 1
    %p98 = por %p96, %p97
    %p100 = scmp.ne.s32.totalorder %s83, %s99
    %p101 = scmp.eq.s32.totalorder %s14, 0
    %p102 = por %p100, %p101
    %p103 = scmp.le.s32.totalorder 1, %s8
    %p104 = scmp.lt.s32.totalorder %s8, 3
    %p105 = pnand %p103, %p104
    %p106 = pneg %p105
    // Predicated region
    $region9: #{_conv_transpose2d_impl.1} parent=5 // pred_check
      _
    $region10: #{_conv_transpose2d_impl.1} parent=5 // pred_check_branch
      %108 = sbr.rel (%p105) target = $region12
    $region11: #{_conv_transpose2d_impl.1} parent=5 // pred_region
      %s109 = ssub.s32 %s8, 1
      // Predicated region
      $region13: #{_conv_transpose2d_impl.1} parent=11 // pred_check
        %p110 = pneg %p67
      $region14: #{_conv_transpose2d_impl.1} parent=11 // pred_check_branch
        %112 = sbr.rel (%p110) target = $region16
      $region15: #{_conv_transpose2d_impl.1} parent=11 // pred_region
        _
      $region16: #{_conv_transpose2d_impl.1} parent=11 // pred_fallthru
        _
    $region12: #{_conv_transpose2d_impl.1} parent=5 // pred_fallthru
      _
    %p113 = scmp.lt.s32.totalorder %s8, 2
    // Predicated region
    $region17: #{_conv_transpose2d_impl.1} parent=5 // pred_check
      %p114 = pneg %p113
    $region18: #{_conv_transpose2d_impl.1} parent=5 // pred_check_branch
      %116 = sbr.rel (%p114) target = $region20
    $region19: #{_conv_transpose2d_impl.1} parent=5 // pred_region
      // Predicated region
      $region21: #{_conv_transpose2d_impl.1} parent=19 // pred_check
        %p117 = pneg %p40
      $region22: #{_conv_transpose2d_impl.1} parent=19 // pred_check_branch
        %119 = sbr.rel (%p117) target = $region24
      $region23: #{_conv_transpose2d_impl.1} parent=19 // pred_region
        %p120 = scmp.lt.s32.totalorder %s15, 1
        %s121 = scalar_select %p120, %s15, 1
        %s122 = smul.addr %s121, 100
        %s123 = smul.addr %s122, 4
        %s124 = scalar_lea.vmem %s0, %s123
      $region24: #{_conv_transpose2d_impl.1} parent=19 // pred_fallthru
        _
    $region20: #{_conv_transpose2d_impl.1} parent=5 // pred_fallthru
      _
    %p125 = scmp.le.s32.totalorder 1, %s8
    %p126 = scmp.lt.s32.totalorder %s8, 3
    %p127 = pnand %p125, %p126
    %p128 = pneg %p127
    // Predicated region
    $region25: #{_conv_transpose2d_impl.1} parent=5 // pred_check
      _
    $region26: #{_conv_transpose2d_impl.1} parent=5 // pred_check_branch
      %130 = sbr.rel (%p127) target = $region28
    $region27: #{_conv_transpose2d_impl.1} parent=5 // pred_region
      %s131 = ssub.s32 %s8, 1
      %p132 = scmp.lt.s32.totalorder %s17, 1
      %s133 = scalar_select %p132, %s17, 1
      %s134 = smul.addr %s133, 100
      %s135 = smul.addr %s134, 4
      %s136 = scalar_lea.vmem %s0, %s135
      %p137 = pneg %p46
      %p138 = pneg %p43
      %p139 = pneg %p67
      %p140 = pneg %p64
      %p141 = pneg %p95
      %p142 = pneg %p92
      %s143 = smul.u32 24, %s18
      %p144 = scmp.lt.s32.totalorder %s17, 1
      %s145 = scalar_select %p144, %s17, 1
      %p146 = scmp.lt.s32.totalorder %s143, 23
      %s147 = scalar_select %p146, %s143, 23
      %s148 = smul.addr %s147, 3
      %s149 = smul.addr %s145, 72
      %s150 = sadd.s32 %s148, %s149
      %s151 = smul.addr %s150, 8
      %s152 = scalar_lea.vmem %s2, %s151
      %p153 = scmp.lt.s32.totalorder %s17, 1
      %s154 = scalar_select %p153, %s17, 1
      %s155 = smul.addr %s154, 100
      %s156 = smul.addr %s155, 4
      %s157 = scalar_lea.vmem %s0, %s156
      %s158 = smul.u32 24, %s18
      %p159 = scmp.lt.s32.totalorder %s17, 1
      %s160 = scalar_select %p159, %s17, 1
      %p161 = scmp.lt.s32.totalorder %s158, 23
      %s162 = scalar_select %p161, %s158, 23
      %s163 = smul.addr %s162, 3
      %s164 = smul.addr %s160, 72
      %s165 = sadd.s32 %s163, %s164
      %s166 = smul.addr %s165, 8
      %s167 = scalar_lea.vmem %s2, %s166
      %s168 = smul.u32 24, %s18
      %s170 = smul.u32 %s18, 24
      %s171 = smul.u32 %s170, 4
      %s172 = smul.addr %s171, 4
      %s173 = scalar_lea.vmem %s157, %s172
      %v174 = vld [vmem:[%s173] sm:$0xf]
      %v175 = vld [vmem:[%s173 + $0x4] sm:$0xf]
      %v176 = vld [vmem:[%s173 + $0x8] sm:$0xf]
      %v177 = vld [vmem:[%s173 + $0x10] sm:$0xf]
      %v178 = vld [vmem:[%s173 + $0x14] sm:$0xf]
      %v179 = vld [vmem:[%s173 + $0x18] sm:$0xf]
      %v180 = vld [vmem:[%s173 + $0x20] sm:$0xf]
      %v181 = vld [vmem:[%s173 + $0x24] sm:$0xf]
      %v182 = vld [vmem:[%s173 + $0x28] sm:$0xf]
      %v183 = vld [vmem:[%s173 + $0x30] sm:$0xf]
      %v184 = vld [vmem:[%s173 + $0x34] sm:$0xf]
      %v185 = vld [vmem:[%s173 + $0x38] sm:$0xf]
      %v186 = vld [vmem:[%s173 + $0x40] sm:$0xf]
      %v187 = vld [vmem:[%s173 + $0x44] sm:$0xf]
      %v188 = vld [vmem:[%s173 + $0x48] sm:$0xf]
      %v189 = vld [vmem:[%s173 + $0x50] sm:$0xf]
      %v190 = vld [vmem:[%s173 + $0x54] sm:$0xf]
      %v191 = vld [vmem:[%s173 + $0x58] sm:$0xf]
      %v192 = vld [vmem:[%s173 + $0x60] sm:$0xf]
      %v193 = vld [vmem:[%s173 + $0x64] sm:$0xf]
      %v194 = vld [vmem:[%s173 + $0x68] sm:$0xf]
      %v195 = vld [vmem:[%s173 + $0x70] sm:$0xf]
      %v196 = vld [vmem:[%s173 + $0x74] sm:$0xf]
      %v197 = vld [vmem:[%s173 + $0x78] sm:$0xf]
      %v198 = vld [vmem:[%s173 + $0x80] sm:$0xf]
      %v199 = vld [vmem:[%s173 + $0x84] sm:$0xf]
      %v200 = vld [vmem:[%s173 + $0x88] sm:$0xf]
      %v201 = vld [vmem:[%s173 + $0x90] sm:$0xf]
      %v202 = vld [vmem:[%s173 + $0x94] sm:$0xf]
      %v203 = vld [vmem:[%s173 + $0x98] sm:$0xf]
      %v204 = vld [vmem:[%s173 + $0xa0] sm:$0xf]
      %v205 = vld [vmem:[%s173 + $0xa4] sm:$0xf]
      %v206 = vld [vmem:[%s173 + $0xa8] sm:$0xf]
      %v207 = vld [vmem:[%s173 + $0xb0] sm:$0xf]
      %v208 = vld [vmem:[%s173 + $0xb4] sm:$0xf]
      %v209 = vld [vmem:[%s173 + $0xb8] sm:$0xf]
      %v210 = vld [vmem:[%s173 + $0xc0] sm:$0xf]
      %v211 = vld [vmem:[%s173 + $0xc4] sm:$0xf]
      %v212 = vld [vmem:[%s173 + $0xc8] sm:$0xf]
      %v213 = vld [vmem:[%s173 + $0xd0] sm:$0xf]
      %v214 = vld [vmem:[%s173 + $0xd4] sm:$0xf]
      %v215 = vld [vmem:[%s173 + $0xd8] sm:$0xf]
      %v216 = vld [vmem:[%s173 + $0xe0] sm:$0xf]
      %v217 = vld [vmem:[%s173 + $0xe4] sm:$0xf]
      %v218 = vld [vmem:[%s173 + $0xe8] sm:$0xf]
      %v219 = vld [vmem:[%s173 + $0xf0] sm:$0xf]
      %v220 = vld [vmem:[%s173 + $0xf4] sm:$0xf]
      %v221 = vld [vmem:[%s173 + $0xf8] sm:$0xf]
      %v222 = vld [vmem:[%s173 + $0x100] sm:$0xf]
      %v223 = vld [vmem:[%s173 + $0x104] sm:$0xf]
      %v224 = vld [vmem:[%s173 + $0x108] sm:$0xf]
      %v225 = vld [vmem:[%s173 + $0x110] sm:$0xf]
      %v226 = vld [vmem:[%s173 + $0x114] sm:$0xf]
      %v227 = vld [vmem:[%s173 + $0x118] sm:$0xf]
      %v228 = vld [vmem:[%s173 + $0x120] sm:$0xf]
      %v229 = vld [vmem:[%s173 + $0x124] sm:$0xf]
      %v230 = vld [vmem:[%s173 + $0x128] sm:$0xf]
      %v231 = vld [vmem:[%s173 + $0x130] sm:$0xf]
      %v232 = vld [vmem:[%s173 + $0x134] sm:$0xf]
      %v233 = vld [vmem:[%s173 + $0x138] sm:$0xf]
      %v234 = vld [vmem:[%s173 + $0x140] sm:$0xf]
      %v235 = vld [vmem:[%s173 + $0x144] sm:$0xf]
      %v236 = vld [vmem:[%s173 + $0x148] sm:$0xf]
      %v237 = vld [vmem:[%s173 + $0x150] sm:$0xf]
      %v238 = vld [vmem:[%s173 + $0x154] sm:$0xf]
      %v239 = vld [vmem:[%s173 + $0x158] sm:$0xf]
      %v240 = vld [vmem:[%s173 + $0x160] sm:$0xf]
      %v241 = vld [vmem:[%s173 + $0x164] sm:$0xf]
      %v242 = vld [vmem:[%s173 + $0x168] sm:$0xf]
      %v243 = vld [vmem:[%s173 + $0x170] sm:$0xf]
      %v244 = vld [vmem:[%s173 + $0x174] sm:$0xf]
      %v245 = vld [vmem:[%s173 + $0x178] sm:$0xf]
      %v246 = vld [vmem:[%s173 + $0x180] sm:$0xf]
      %v247 = vld [vmem:[%s173 + $0x184] sm:$0xf]
      %v248 = vld [vmem:[%s173 + $0x188] sm:$0xf]
      %v249 = vld [vmem:[%s173 + $0xc] sm:$0x1]
      %v250 = vld [vmem:[%s173 + $0x1c] sm:$0x1]
      %v251 = vld [vmem:[%s173 + $0x2c] sm:$0x1]
      %v252 = vld [vmem:[%s173 + $0x3c] sm:$0x1]
      %v253 = vld [vmem:[%s173 + $0x4c] sm:$0x1]
      %v254 = vld [vmem:[%s173 + $0x5c] sm:$0x1]
      %v255 = vld [vmem:[%s173 + $0x6c] sm:$0x1]
      %v256 = vld [vmem:[%s173 + $0x7c] sm:$0x1]
      %v257 = vld [vmem:[%s173 + $0x8c] sm:$0x1]
      %v258 = vld [vmem:[%s173 + $0x9c] sm:$0x1]
      %v259 = vld [vmem:[%s173 + $0xac] sm:$0x1]
      %v260 = vld [vmem:[%s173 + $0xbc] sm:$0x1]
      %v261 = vld [vmem:[%s173 + $0xcc] sm:$0x1]
      %v262 = vld [vmem:[%s173 + $0xdc] sm:$0x1]
      %v263 = vld [vmem:[%s173 + $0xec] sm:$0x1]
      %v264 = vld [vmem:[%s173 + $0xfc] sm:$0x1]
      %v265 = vld [vmem:[%s173 + $0x10c] sm:$0x1]
      %v266 = vld [vmem:[%s173 + $0x11c] sm:$0x1]
      %v267 = vld [vmem:[%s173 + $0x12c] sm:$0x1]
      %v268 = vld [vmem:[%s173 + $0x13c] sm:$0x1]
      %v269 = vld [vmem:[%s173 + $0x14c] sm:$0x1]
      %v270 = vld [vmem:[%s173 + $0x15c] sm:$0x1]
      %v271 = vld [vmem:[%s173 + $0x16c] sm:$0x1]
      %v272 = vld [vmem:[%s173 + $0x17c] sm:$0x1]
      %v273 = vld [vmem:[%s173 + $0x18c] sm:$0x1]
      %v346 = vunpack.c.l.b16 %v174
      %v347 = vunpack.c.l.b16 %v175
      %v348 = vunpack.c.l.b16 %v176
      %v349 = vunpack.c.l.b16 %v177
      %v350 = vunpack.c.l.b16 %v178
      %v351 = vunpack.c.l.b16 %v179
      %v352 = vunpack.c.l.b16 %v180
      %v353 = vunpack.c.l.b16 %v181
      %v354 = vunpack.c.l.b16 %v182
      %v355 = vunpack.c.l.b16 %v183
      %v356 = vunpack.c.l.b16 %v184
      %v357 = vunpack.c.l.b16 %v185
      %v358 = vunpack.c.l.b16 %v186
      %v359 = vunpack.c.l.b16 %v187
      %v360 = vunpack.c.l.b16 %v188
      %v361 = vunpack.c.l.b16 %v189
      %v362 = vunpack.c.l.b16 %v190
      %v363 = vunpack.c.l.b16 %v191
      %v364 = vunpack.c.l.b16 %v192
      %v365 = vunpack.c.l.b16 %v193
      %v366 = vunpack.c.l.b16 %v194
      %v367 = vunpack.c.l.b16 %v195
      %v368 = vunpack.c.l.b16 %v196
      %v369 = vunpack.c.l.b16 %v197
      %v370 = vunpack.c.l.b16 %v198
      %v371 = vunpack.c.l.b16 %v199
      %v372 = vunpack.c.l.b16 %v200
      %v373 = vunpack.c.l.b16 %v201
      %v374 = vunpack.c.l.b16 %v202
      %v375 = vunpack.c.l.b16 %v203
      %v376 = vunpack.c.l.b16 %v204
      %v377 = vunpack.c.l.b16 %v205
      %v378 = vunpack.c.l.b16 %v206
      %v379 = vunpack.c.l.b16 %v207
      %v380 = vunpack.c.l.b16 %v208
      %v381 = vunpack.c.l.b16 %v209
      %v382 = vunpack.c.l.b16 %v210
      %v383 = vunpack.c.l.b16 %v211
      %v384 = vunpack.c.l.b16 %v212
      %v385 = vunpack.c.l.b16 %v213
      %v386 = vunpack.c.l.b16 %v214
      %v387 = vunpack.c.l.b16 %v215
      %v388 = vunpack.c.l.b16 %v216
      %v389 = vunpack.c.l.b16 %v217
      %v390 = vunpack.c.l.b16 %v218
      %v391 = vunpack.c.l.b16 %v219
      %v392 = vunpack.c.l.b16 %v220
      %v393 = vunpack.c.l.b16 %v221
      %v394 = vunpack.c.l.b16 %v222
      %v395 = vunpack.c.l.b16 %v223
      %v396 = vunpack.c.l.b16 %v224
      %v397 = vunpack.c.l.b16 %v225
      %v398 = vunpack.c.l.b16 %v226
      %v399 = vunpack.c.l.b16 %v227
      %v400 = vunpack.c.l.b16 %v228
      %v401 = vunpack.c.l.b16 %v229
      %v402 = vunpack.c.l.b16 %v230
      %v403 = vunpack.c.l.b16 %v231
      %v404 = vunpack.c.l.b16 %v232
      %v405 = vunpack.c.l.b16 %v233
      %v406 = vunpack.c.l.b16 %v234
      %v407 = vunpack.c.l.b16 %v235
      %v408 = vunpack.c.l.b16 %v236
      %v409 = vunpack.c.l.b16 %v237
      %v410 = vunpack.c.l.b16 %v238
      %v411 = vunpack.c.l.b16 %v239
      %v412 = vunpack.c.l.b16 %v240
      %v413 = vunpack.c.l.b16 %v241
      %v414 = vunpack.c.l.b16 %v242
      %v415 = vunpack.c.l.b16 %v243
      %v416 = vunpack.c.l.b16 %v244
      %v417 = vunpack.c.l.b16 %v245
      %v418 = vpack.c.b16 %v347, %v346
      %v419 = vpack.c.b16 %v348, %v348
      %v420 = vpack.c.b16 %v350, %v349
      %v421 = vpack.c.b16 %v351, %v351
      %v422 = vpack.c.b16 %v353, %v352
      %v423 = vpack.c.b16 %v354, %v354
      %v424 = vpack.c.b16 %v356, %v355
      %v425 = vpack.c.b16 %v357, %v357
      %v426 = vpack.c.b16 %v359, %v358
      %v427 = vpack.c.b16 %v360, %v360
      %v428 = vpack.c.b16 %v362, %v361
      %v429 = vpack.c.b16 %v363, %v363
      %v430 = vpack.c.b16 %v365, %v364
      %v431 = vpack.c.b16 %v366, %v366
      %v432 = vpack.c.b16 %v368, %v367
      %v433 = vpack.c.b16 %v369, %v369
      %v434 = vpack.c.b16 %v371, %v370
      %v435 = vpack.c.b16 %v372, %v372
      %v436 = vpack.c.b16 %v374, %v373
      %v437 = vpack.c.b16 %v375, %v375
      %v438 = vpack.c.b16 %v377, %v376
      %v439 = vpack.c.b16 %v378, %v378
      %v440 = vpack.c.b16 %v380, %v379
      %v441 = vpack.c.b16 %v381, %v381
      %v442 = vpack.c.b16 %v383, %v382
      %v443 = vpack.c.b16 %v384, %v384
      %v444 = vpack.c.b16 %v386, %v385
      %v445 = vpack.c.b16 %v387, %v387
      %v446 = vpack.c.b16 %v389, %v388
      %v447 = vpack.c.b16 %v390, %v390
      %v448 = vpack.c.b16 %v392, %v391
      %v449 = vpack.c.b16 %v393, %v393
      %v450 = vpack.c.b16 %v395, %v394
      %v451 = vpack.c.b16 %v396, %v396
      %v452 = vpack.c.b16 %v398, %v397
      %v453 = vpack.c.b16 %v399, %v399
      %v454 = vpack.c.b16 %v401, %v400
      %v455 = vpack.c.b16 %v402, %v402
      %v456 = vpack.c.b16 %v404, %v403
      %v457 = vpack.c.b16 %v405, %v405
      %v458 = vpack.c.b16 %v407, %v406
      %v459 = vpack.c.b16 %v408, %v408
      %v460 = vpack.c.b16 %v410, %v409
      %v461 = vpack.c.b16 %v411, %v411
      %v462 = vpack.c.b16 %v413, %v412
      %v463 = vpack.c.b16 %v414, %v414
      %v464 = vpack.c.b16 %v416, %v415
      %v465 = vpack.c.b16 %v417, %v417
      %v490 = vunpack.c.l.b16 %v249
      %v491 = vunpack.c.l.b16 %v250
      %v492 = vunpack.c.l.b16 %v251
      %v493 = vunpack.c.l.b16 %v252
      %v494 = vunpack.c.l.b16 %v253
      %v495 = vunpack.c.l.b16 %v254
      %v496 = vunpack.c.l.b16 %v255
      %v497 = vunpack.c.l.b16 %v256
      %v498 = vunpack.c.l.b16 %v257
      %v499 = vunpack.c.l.b16 %v258
      %v500 = vunpack.c.l.b16 %v259
      %v501 = vunpack.c.l.b16 %v260
      %v502 = vunpack.c.l.b16 %v261
      %v503 = vunpack.c.l.b16 %v262
      %v504 = vunpack.c.l.b16 %v263
      %v505 = vunpack.c.l.b16 %v264
      %v506 = vunpack.c.l.b16 %v265
      %v507 = vunpack.c.l.b16 %v266
      %v508 = vunpack.c.l.b16 %v267
      %v509 = vunpack.c.l.b16 %v268
      %v510 = vunpack.c.l.b16 %v269
      %v511 = vunpack.c.l.b16 %v270
      %v512 = vunpack.c.l.b16 %v271
      %v513 = vunpack.c.l.b16 %v272
      %v514 = vpack.c.b16 %v490, %v348
      %v515 = vpack.c.b16 %v491, %v351
      %v516 = vpack.c.b16 %v492, %v354
      %v517 = vpack.c.b16 %v493, %v357
      %v518 = vpack.c.b16 %v494, %v360
      %v519 = vpack.c.b16 %v495, %v363
      %v520 = vpack.c.b16 %v496, %v366
      %v521 = vpack.c.b16 %v497, %v369
      %v522 = vpack.c.b16 %v498, %v372
      %v523 = vpack.c.b16 %v499, %v375
      %v524 = vpack.c.b16 %v500, %v378
      %v525 = vpack.c.b16 %v501, %v381
      %v526 = vpack.c.b16 %v502, %v384
      %v527 = vpack.c.b16 %v503, %v387
      %v528 = vpack.c.b16 %v504, %v390
      %v529 = vpack.c.b16 %v505, %v393
      %v530 = vpack.c.b16 %v506, %v396
      %v531 = vpack.c.b16 %v507, %v399
      %v532 = vpack.c.b16 %v508, %v402
      %v533 = vpack.c.b16 %v509, %v405
      %v534 = vpack.c.b16 %v510, %v408
      %v535 = vpack.c.b16 %v511, %v411
      %v536 = vpack.c.b16 %v512, %v414
      %v537 = vpack.c.b16 %v513, %v417
      %vm538 = vsmask.f32 7424
      %v540 = vshrl.u32 %v418, 16
      %v542 = vshll.u32 %v418, 16
      %v544 = vrot.slane %v542, 1
      %v545 = vor.u32 %v540, %v544
      %v547 = vshll.u32 %v514, 16
      %v549 = vrot.slane %v547, 1
      %v550 = vsel %vm538, %v545, %v549
      %v551 = vshrl.u32 %v514, 16
      %v553 = vor.u32 %v551, %v549
      %v555 = vshrl.u32 %v420, 16
      %v557 = vshll.u32 %v420, 16
      %v559 = vrot.slane %v557, 1
      %v560 = vor.u32 %v555, %v559
      %v562 = vshll.u32 %v515, 16
      %v564 = vrot.slane %v562, 1
      %v565 = vsel %vm538, %v560, %v564
      %v566 = vshrl.u32 %v515, 16
      %v568 = vor.u32 %v566, %v564
      %v570 = vshrl.u32 %v422, 16
      %v572 = vshll.u32 %v422, 16
      %v574 = vrot.slane %v572, 1
      %v575 = vor.u32 %v570, %v574
      %v577 = vshll.u32 %v516, 16
      %v579 = vrot.slane %v577, 1
      %v580 = vsel %vm538, %v575, %v579
      %v581 = vshrl.u32 %v516, 16
      %v583 = vor.u32 %v581, %v579
      %v585 = vshrl.u32 %v424, 16
      %v587 = vshll.u32 %v424, 16
      %v589 = vrot.slane %v587, 1
      %v590 = vor.u32 %v585, %v589
      %v592 = vshll.u32 %v517, 16
      %v594 = vrot.slane %v592, 1
      %v595 = vsel %vm538, %v590, %v594
      %v596 = vshrl.u32 %v517, 16
      %v598 = vor.u32 %v596, %v594
      %v600 = vshrl.u32 %v426, 16
      %v602 = vshll.u32 %v426, 16
      %v604 = vrot.slane %v602, 1
      %v605 = vor.u32 %v600, %v604
      %v607 = vshll.u32 %v518, 16
      %v609 = vrot.slane %v607, 1
      %v610 = vsel %vm538, %v605, %v609
      %v611 = vshrl.u32 %v518, 16
      %v613 = vor.u32 %v611, %v609
      %v615 = vshrl.u32 %v428, 16
      %v617 = vshll.u32 %v428, 16
      %v619 = vrot.slane %v617, 1
      %v620 = vor.u32 %v615, %v619
      %v622 = vshll.u32 %v519, 16
      %v624 = vrot.slane %v622, 1
      %v625 = vsel %vm538, %v620, %v624
      %v626 = vshrl.u32 %v519, 16
      %v628 = vor.u32 %v626, %v624
      %v630 = vshrl.u32 %v430, 16
      %v632 = vshll.u32 %v430, 16
      %v634 = vrot.slane %v632, 1
      %v635 = vor.u32 %v630, %v634
      %v637 = vshll.u32 %v520, 16
      %v639 = vrot.slane %v637, 1
      %v640 = vsel %vm538, %v635, %v639
      %v641 = vshrl.u32 %v520, 16
      %v643 = vor.u32 %v641, %v639
      %v645 = vshrl.u32 %v432, 16
      %v647 = vshll.u32 %v432, 16
      %v649 = vrot.slane %v647, 1
      %v650 = vor.u32 %v645, %v649
      %v652 = vshll.u32 %v521, 16
      %v654 = vrot.slane %v652, 1
      %v655 = vsel %vm538, %v650, %v654
      %v656 = vshrl.u32 %v521, 16
      %v658 = vor.u32 %v656, %v654
      %v660 = vshrl.u32 %v434, 16
      %v662 = vshll.u32 %v434, 16
      %v664 = vrot.slane %v662, 1
      %v665 = vor.u32 %v660, %v664
      %v667 = vshll.u32 %v522, 16
      %v669 = vrot.slane %v667, 1
      %v670 = vsel %vm538, %v665, %v669
      %v671 = vshrl.u32 %v522, 16
      %v673 = vor.u32 %v671, %v669
      %v675 = vshrl.u32 %v436, 16
      %v677 = vshll.u32 %v436, 16
      %v679 = vrot.slane %v677, 1
      %v680 = vor.u32 %v675, %v679
      %v682 = vshll.u32 %v523, 16
      %v684 = vrot.slane %v682, 1
      %v685 = vsel %vm538, %v680, %v684
      %v686 = vshrl.u32 %v523, 16
      %v688 = vor.u32 %v686, %v684
      %v690 = vshrl.u32 %v438, 16
      %v692 = vshll.u32 %v438, 16
      %v694 = vrot.slane %v692, 1
      %v695 = vor.u32 %v690, %v694
      %v697 = vshll.u32 %v524, 16
      %v699 = vrot.slane %v697, 1
      %v700 = vsel %vm538, %v695, %v699
      %v701 = vshrl.u32 %v524, 16
      %v703 = vor.u32 %v701, %v699
      %v705 = vshrl.u32 %v440, 16
      %v707 = vshll.u32 %v440, 16
      %v709 = vrot.slane %v707, 1
      %v710 = vor.u32 %v705, %v709
      %v712 = vshll.u32 %v525, 16
      %v714 = vrot.slane %v712, 1
      %v715 = vsel %vm538, %v710, %v714
      %v716 = vshrl.u32 %v525, 16
      %v718 = vor.u32 %v716, %v714
      %v720 = vshrl.u32 %v442, 16
      %v722 = vshll.u32 %v442, 16
      %v724 = vrot.slane %v722, 1
      %v725 = vor.u32 %v720, %v724
      %v727 = vshll.u32 %v526, 16
      %v729 = vrot.slane %v727, 1
      %v730 = vsel %vm538, %v725, %v729
      %v731 = vshrl.u32 %v526, 16
      %v733 = vor.u32 %v731, %v729
      %v735 = vshrl.u32 %v444, 16
      %v737 = vshll.u32 %v444, 16
      %v739 = vrot.slane %v737, 1
      %v740 = vor.u32 %v735, %v739
      %v742 = vshll.u32 %v527, 16
      %v744 = vrot.slane %v742, 1
      %v745 = vsel %vm538, %v740, %v744
      %v746 = vshrl.u32 %v527, 16
      %v748 = vor.u32 %v746, %v744
      %v750 = vshrl.u32 %v446, 16
      %v752 = vshll.u32 %v446, 16
      %v754 = vrot.slane %v752, 1
      %v755 = vor.u32 %v750, %v754
      %v757 = vshll.u32 %v528, 16
      %v759 = vrot.slane %v757, 1
      %v760 = vsel %vm538, %v755, %v759
      %v761 = vshrl.u32 %v528, 16
      %v763 = vor.u32 %v761, %v759
      %v765 = vshrl.u32 %v448, 16
      %v767 = vshll.u32 %v448, 16
      %v769 = vrot.slane %v767, 1
      %v770 = vor.u32 %v765, %v769
      %v772 = vshll.u32 %v529, 16
      %v774 = vrot.slane %v772, 1
      %v775 = vsel %vm538, %v770, %v774
      %v776 = vshrl.u32 %v529, 16
      %v778 = vor.u32 %v776, %v774
      %v780 = vshrl.u32 %v450, 16
      %v782 = vshll.u32 %v450, 16
      %v784 = vrot.slane %v782, 1
      %v785 = vor.u32 %v780, %v784
      %v787 = vshll.u32 %v530, 16
      %v789 = vrot.slane %v787, 1
      %v790 = vsel %vm538, %v785, %v789
      %v791 = vshrl.u32 %v530, 16
      %v793 = vor.u32 %v791, %v789
      %v795 = vshrl.u32 %v452, 16
      %v797 = vshll.u32 %v452, 16
      %v799 = vrot.slane %v797, 1
      %v800 = vor.u32 %v795, %v799
      %v802 = vshll.u32 %v531, 16
      %v804 = vrot.slane %v802, 1
      %v805 = vsel %vm538, %v800, %v804
      %v806 = vshrl.u32 %v531, 16
      %v808 = vor.u32 %v806, %v804
      %v810 = vshrl.u32 %v454, 16
      %v812 = vshll.u32 %v454, 16
      %v814 = vrot.slane %v812, 1
      %v815 = vor.u32 %v810, %v814
      %v817 = vshll.u32 %v532, 16
      %v819 = vrot.slane %v817, 1
      %v820 = vsel %vm538, %v815, %v819
      %v821 = vshrl.u32 %v532, 16
      %v823 = vor.u32 %v821, %v819
      %v825 = vshrl.u32 %v456, 16
      %v827 = vshll.u32 %v456, 16
      %v829 = vrot.slane %v827, 1
      %v830 = vor.u32 %v825, %v829
      %v832 = vshll.u32 %v533, 16
      %v834 = vrot.slane %v832, 1
      %v835 = vsel %vm538, %v830, %v834
      %v836 = vshrl.u32 %v533, 16
      %v838 = vor.u32 %v836, %v834
      %v840 = vshrl.u32 %v458, 16
      %v842 = vshll.u32 %v458, 16
      %v844 = vrot.slane %v842, 1
      %v845 = vor.u32 %v840, %v844
      %v847 = vshll.u32 %v534, 16
      %v849 = vrot.slane %v847, 1
      %v850 = vsel %vm538, %v845, %v849
      %v851 = vshrl.u32 %v534, 16
      %v853 = vor.u32 %v851, %v849
      %v855 = vshrl.u32 %v460, 16
      %v857 = vshll.u32 %v460, 16
      %v859 = vrot.slane %v857, 1
      %v860 = vor.u32 %v855, %v859
      %v862 = vshll.u32 %v535, 16
      %v864 = vrot.slane %v862, 1
      %v865 = vsel %vm538, %v860, %v864
      %v866 = vshrl.u32 %v535, 16
      %v868 = vor.u32 %v866, %v864
      %v870 = vshrl.u32 %v462, 16
      %v872 = vshll.u32 %v462, 16
      %v874 = vrot.slane %v872, 1
      %v875 = vor.u32 %v870, %v874
      %v877 = vshll.u32 %v536, 16
      %v879 = vrot.slane %v877, 1
      %v880 = vsel %vm538, %v875, %v879
      %v881 = vshrl.u32 %v536, 16
      %v883 = vor.u32 %v881, %v879
      %v885 = vshrl.u32 %v464, 16
      %v887 = vshll.u32 %v464, 16
      %v889 = vrot.slane %v887, 1
      %v890 = vor.u32 %v885, %v889
      %v892 = vshll.u32 %v537, 16
      %v894 = vrot.slane %v892, 1
      %v895 = vsel %vm538, %v890, %v894
      %v896 = vshrl.u32 %v537, 16
      %v898 = vor.u32 %v896, %v894
      %899 = vrot.lane.b32.xlu0 %v550, 4
      %v900 = vpop.permute.xlu0 %899
      %901 = vrot.lane.b32.xlu0 %v553, 4
      %v902 = vpop.permute.xlu0 %901
      %903 = vrot.lane.b32.xlu0 %v565, 4
      %v904 = vpop.permute.xlu0 %903
      %905 = vrot.lane.b32.xlu0 %v568, 4
      %v906 = vpop.permute.xlu0 %905
      %907 = vrot.lane.b32.xlu0 %v580, 4
      %v908 = vpop.permute.xlu0 %907
      %909 = vrot.lane.b32.xlu0 %v583, 4
      %v910 = vpop.permute.xlu0 %909
      %911 = vrot.lane.b32.xlu0 %v595, 4
      %v912 = vpop.permute.xlu0 %911
      %913 = vrot.lane.b32.xlu0 %v598, 4
      %v914 = vpop.permute.xlu0 %913
      %915 = vrot.lane.b32.xlu0 %v610, 4
      %v916 = vpop.permute.xlu0 %915
      %917 = vrot.lane.b32.xlu0 %v613, 4
      %v918 = vpop.permute.xlu0 %917
      %919 = vrot.lane.b32.xlu0 %v625, 4
      %v920 = vpop.permute.xlu0 %919
      %921 = vrot.lane.b32.xlu0 %v628, 4
      %v922 = vpop.permute.xlu0 %921
      %923 = vrot.lane.b32.xlu0 %v640, 4
      %v924 = vpop.permute.xlu0 %923
      %925 = vrot.lane.b32.xlu0 %v643, 4
      %v926 = vpop.permute.xlu0 %925
      %927 = vrot.lane.b32.xlu0 %v655, 4
      %v928 = vpop.permute.xlu0 %927
      %929 = vrot.lane.b32.xlu0 %v658, 4
      %v930 = vpop.permute.xlu0 %929
      %931 = vrot.lane.b32.xlu0 %v670, 4
      %v932 = vpop.permute.xlu0 %931
      %933 = vrot.lane.b32.xlu0 %v673, 4
      %v934 = vpop.permute.xlu0 %933
      %935 = vrot.lane.b32.xlu0 %v685, 4
      %v936 = vpop.permute.xlu0 %935
      %937 = vrot.lane.b32.xlu0 %v688, 4
      %v938 = vpop.permute.xlu0 %937
      %939 = vrot.lane.b32.xlu0 %v700, 4
      %v940 = vpop.permute.xlu0 %939
      %941 = vrot.lane.b32.xlu0 %v703, 4
      %v942 = vpop.permute.xlu0 %941
      %943 = vrot.lane.b32.xlu0 %v715, 4
      %v944 = vpop.permute.xlu0 %943
      %945 = vrot.lane.b32.xlu0 %v718, 4
      %v946 = vpop.permute.xlu0 %945
      %947 = vrot.lane.b32.xlu0 %v730, 4
      %v948 = vpop.permute.xlu0 %947
      %949 = vrot.lane.b32.xlu0 %v733, 4
      %v950 = vpop.permute.xlu0 %949
      %951 = vrot.lane.b32.xlu0 %v745, 4
      %v952 = vpop.permute.xlu0 %951
      %953 = vrot.lane.b32.xlu0 %v748, 4
      %v954 = vpop.permute.xlu0 %953
      %955 = vrot.lane.b32.xlu0 %v760, 4
      %v956 = vpop.permute.xlu0 %955
      %957 = vrot.lane.b32.xlu0 %v763, 4
      %v958 = vpop.permute.xlu0 %957
      %959 = vrot.lane.b32.xlu0 %v775, 4
      %v960 = vpop.permute.xlu0 %959
      %961 = vrot.lane.b32.xlu0 %v778, 4
      %v962 = vpop.permute.xlu0 %961
      %963 = vrot.lane.b32.xlu0 %v790, 4
      %v964 = vpop.permute.xlu0 %963
      %965 = vrot.lane.b32.xlu0 %v793, 4
      %v966 = vpop.permute.xlu0 %965
      %967 = vrot.lane.b32.xlu0 %v805, 4
      %v968 = vpop.permute.xlu0 %967
      %969 = vrot.lane.b32.xlu0 %v808, 4
      %v970 = vpop.permute.xlu0 %969
      %971 = vrot.lane.b32.xlu0 %v820, 4
      %v972 = vpop.permute.xlu0 %971
      %973 = vrot.lane.b32.xlu0 %v823, 4
      %v974 = vpop.permute.xlu0 %973
      %975 = vrot.lane.b32.xlu0 %v835, 4
      %v976 = vpop.permute.xlu0 %975
      %977 = vrot.lane.b32.xlu0 %v838, 4
      %v978 = vpop.permute.xlu0 %977
      %979 = vrot.lane.b32.xlu0 %v850, 4
      %v980 = vpop.permute.xlu0 %979
      %981 = vrot.lane.b32.xlu0 %v853, 4
      %v982 = vpop.permute.xlu0 %981
      %983 = vrot.lane.b32.xlu0 %v865, 4
      %v984 = vpop.permute.xlu0 %983
      %985 = vrot.lane.b32.xlu0 %v868, 4
      %v986 = vpop.permute.xlu0 %985
      %987 = vrot.lane.b32.xlu0 %v880, 4
      %v988 = vpop.permute.xlu0 %987
      %989 = vrot.lane.b32.xlu0 %v883, 4
      %v990 = vpop.permute.xlu0 %989
      %991 = vrot.lane.b32.xlu0 %v895, 4
      %v992 = vpop.permute.xlu0 %991
      %993 = vrot.lane.b32.xlu0 %v898, 4
      %v994 = vpop.permute.xlu0 %993
      %v998 = vunpack.c.l.b16 %v246
      %v999 = vunpack.c.l.b16 %v247
      %v1000 = vunpack.c.l.b16 %v248
      %v1001 = vpack.c.b16 %v999, %v998
      %v1002 = vpack.c.b16 %v1000, %v1000
      %1003 = vrot.lane.b32.xlu0 %v420, 8
      %v1004 = vpop.permute.xlu0 %1003
      %1005 = vrot.lane.b32.xlu0 %v421, 8
      %v1006 = vpop.permute.xlu0 %1005
      %1007 = vrot.lane.b32.xlu0 %v422, 8
      %v1008 = vpop.permute.xlu0 %1007
      %1009 = vrot.lane.b32.xlu0 %v423, 8
      %v1010 = vpop.permute.xlu0 %1009
      %1011 = vrot.lane.b32.xlu0 %v424, 8
      %v1012 = vpop.permute.xlu0 %1011
      %1013 = vrot.lane.b32.xlu0 %v425, 8
      %v1014 = vpop.permute.xlu0 %1013
      %1015 = vrot.lane.b32.xlu0 %v426, 8
      %v1016 = vpop.permute.xlu0 %1015
      %1017 = vrot.lane.b32.xlu0 %v427, 8
      %v1018 = vpop.permute.xlu0 %1017
      %1019 = vrot.lane.b32.xlu0 %v428, 8
      %v1020 = vpop.permute.xlu0 %1019
      %1021 = vrot.lane.b32.xlu0 %v429, 8
      %v1022 = vpop.permute.xlu0 %1021
      %1023 = vrot.lane.b32.xlu0 %v430, 8
      %v1024 = vpop.permute.xlu0 %1023
      %1025 = vrot.lane.b32.xlu0 %v431, 8
      %v1026 = vpop.permute.xlu0 %1025
      %1027 = vrot.lane.b32.xlu0 %v432, 8
      %v1028 = vpop.permute.xlu0 %1027
      %1029 = vrot.lane.b32.xlu0 %v433, 8
      %v1030 = vpop.permute.xlu0 %1029
      %1031 = vrot.lane.b32.xlu0 %v434, 8
      %v1032 = vpop.permute.xlu0 %1031
      %1033 = vrot.lane.b32.xlu0 %v435, 8
      %v1034 = vpop.permute.xlu0 %1033
      %1035 = vrot.lane.b32.xlu0 %v436, 8
      %v1036 = vpop.permute.xlu0 %1035
      %1037 = vrot.lane.b32.xlu0 %v437, 8
      %v1038 = vpop.permute.xlu0 %1037
      %1039 = vrot.lane.b32.xlu0 %v438, 8
      %v1040 = vpop.permute.xlu0 %1039
      %1041 = vrot.lane.b32.xlu0 %v439, 8
      %v1042 = vpop.permute.xlu0 %1041
      %1043 = vrot.lane.b32.xlu0 %v440, 8
      %v1044 = vpop.permute.xlu0 %1043
      %1045 = vrot.lane.b32.xlu0 %v441, 8
      %v1046 = vpop.permute.xlu0 %1045
      %1047 = vrot.lane.b32.xlu0 %v442, 8
      %v1048 = vpop.permute.xlu0 %1047
      %1049 = vrot.lane.b32.xlu0 %v443, 8
      %v1050 = vpop.permute.xlu0 %1049
      %1051 = vrot.lane.b32.xlu0 %v444, 8
      %v1052 = vpop.permute.xlu0 %1051
      %1053 = vrot.lane.b32.xlu0 %v445, 8
      %v1054 = vpop.permute.xlu0 %1053
      %1055 = vrot.lane.b32.xlu0 %v446, 8
      %v1056 = vpop.permute.xlu0 %1055
      %1057 = vrot.lane.b32.xlu0 %v447, 8
      %v1058 = vpop.permute.xlu0 %1057
      %1059 = vrot.lane.b32.xlu0 %v448, 8
      %v1060 = vpop.permute.xlu0 %1059
      %1061 = vrot.lane.b32.xlu0 %v449, 8
      %v1062 = vpop.permute.xlu0 %1061
      %1063 = vrot.lane.b32.xlu0 %v450, 8
      %v1064 = vpop.permute.xlu0 %1063
      %1065 = vrot.lane.b32.xlu0 %v451, 8
      %v1066 = vpop.permute.xlu0 %1065
      %1067 = vrot.lane.b32.xlu0 %v452, 8
      %v1068 = vpop.permute.xlu0 %1067
      %1069 = vrot.lane.b32.xlu0 %v453, 8
      %v1070 = vpop.permute.xlu0 %1069
      %1071 = vrot.lane.b32.xlu0 %v454, 8
      %v1072 = vpop.permute.xlu0 %1071
      %1073 = vrot.lane.b32.xlu0 %v455, 8
      %v1074 = vpop.permute.xlu0 %1073
      %1075 = vrot.lane.b32.xlu0 %v456, 8
      %v1076 = vpop.permute.xlu0 %1075
      %1077 = vrot.lane.b32.xlu0 %v457, 8
      %v1078 = vpop.permute.xlu0 %1077
      %1079 = vrot.lane.b32.xlu0 %v458, 8
      %v1080 = vpop.permute.xlu0 %1079
      %1081 = vrot.lane.b32.xlu0 %v459, 8
      %v1082 = vpop.permute.xlu0 %1081
      %1083 = vrot.lane.b32.xlu0 %v460, 8
      %v1084 = vpop.permute.xlu0 %1083
      %1085 = vrot.lane.b32.xlu0 %v461, 8
      %v1086 = vpop.permute.xlu0 %1085
      %1087 = vrot.lane.b32.xlu0 %v462, 8
      %v1088 = vpop.permute.xlu0 %1087
      %1089 = vrot.lane.b32.xlu0 %v463, 8
      %v1090 = vpop.permute.xlu0 %1089
      %1091 = vrot.lane.b32.xlu0 %v464, 8
      %v1092 = vpop.permute.xlu0 %1091
      %1093 = vrot.lane.b32.xlu0 %v465, 8
      %v1094 = vpop.permute.xlu0 %1093
      %1095 = vrot.lane.b32.xlu0 %v1001, 8
      %v1096 = vpop.permute.xlu0 %1095
      %1097 = vrot.lane.b32.xlu0 %v1002, 8
      %v1098 = vpop.permute.xlu0 %1097
      %v1100 = vunpack.c.l.b16 %v273
      %v1101 = vpack.c.b16 %v1100, %v1000
      %v1103 = vshrl.u32 %v1001, 16
      %v1105 = vshll.u32 %v1001, 16
      %v1107 = vrot.slane %v1105, 1
      %v1108 = vor.u32 %v1103, %v1107
      %v1110 = vshll.u32 %v1101, 16
      %v1112 = vrot.slane %v1110, 1
      %v1113 = vsel %vm538, %v1108, %v1112
      %v1114 = vshrl.u32 %v1101, 16
      %v1116 = vor.u32 %v1114, %v1112
      %1117 = vrot.lane.b32.xlu0 %v565, 12
      %v1118 = vpop.permute.xlu0 %1117
      %1119 = vrot.lane.b32.xlu0 %v568, 12
      %v1120 = vpop.permute.xlu0 %1119
      %1121 = vrot.lane.b32.xlu0 %v580, 12
      %v1122 = vpop.permute.xlu0 %1121
      %1123 = vrot.lane.b32.xlu0 %v583, 12
      %v1124 = vpop.permute.xlu0 %1123
      %1125 = vrot.lane.b32.xlu0 %v595, 12
      %v1126 = vpop.permute.xlu0 %1125
      %1127 = vrot.lane.b32.xlu0 %v598, 12
      %v1128 = vpop.permute.xlu0 %1127
      %1129 = vrot.lane.b32.xlu0 %v610, 12
      %v1130 = vpop.permute.xlu0 %1129
      %1131 = vrot.lane.b32.xlu0 %v613, 12
      %v1132 = vpop.permute.xlu0 %1131
      %1133 = vrot.lane.b32.xlu0 %v625, 12
      %v1134 = vpop.permute.xlu0 %1133
      %1135 = vrot.lane.b32.xlu0 %v628, 12
      %v1136 = vpop.permute.xlu0 %1135
      %1137 = vrot.lane.b32.xlu0 %v640, 12
      %v1138 = vpop.permute.xlu0 %1137
      %1139 = vrot.lane.b32.xlu0 %v643, 12
      %v1140 = vpop.permute.xlu0 %1139
      %1141 = vrot.lane.b32.xlu0 %v655, 12
      %v1142 = vpop.permute.xlu0 %1141
      %1143 = vrot.lane.b32.xlu0 %v658, 12
      %v1144 = vpop.permute.xlu0 %1143
      %1145 = vrot.lane.b32.xlu0 %v670, 12
      %v1146 = vpop.permute.xlu0 %1145
      %1147 = vrot.lane.b32.xlu0 %v673, 12
      %v1148 = vpop.permute.xlu0 %1147
      %1149 = vrot.lane.b32.xlu0 %v685, 12
      %v1150 = vpop.permute.xlu0 %1149
      %1151 = vrot.lane.b32.xlu0 %v688, 12
      %v1152 = vpop.permute.xlu0 %1151
      %1153 = vrot.lane.b32.xlu0 %v700, 12
      %v1154 = vpop.permute.xlu0 %1153
      %1155 = vrot.lane.b32.xlu0 %v703, 12
      %v1156 = vpop.permute.xlu0 %1155
      %1157 = vrot.lane.b32.xlu0 %v715, 12
      %v1158 = vpop.permute.xlu0 %1157
      %1159 = vrot.lane.b32.xlu0 %v718, 12
      %v1160 = vpop.permute.xlu0 %1159
      %1161 = vrot.lane.b32.xlu0 %v730, 12
      %v1162 = vpop.permute.xlu0 %1161
      %1163 = vrot.lane.b32.xlu0 %v733, 12
      %v1164 = vpop.permute.xlu0 %1163
      %1165 = vrot.lane.b32.xlu0 %v745, 12
      %v1166 = vpop.permute.xlu0 %1165
      %1167 = vrot.lane.b32.xlu0 %v748, 12
      %v1168 = vpop.permute.xlu0 %1167
      %1169 = vrot.lane.b32.xlu0 %v760, 12
      %v1170 = vpop.permute.xlu0 %1169
      %1171 = vrot.lane.b32.xlu0 %v763, 12
      %v1172 = vpop.permute.xlu0 %1171
      %1173 = vrot.lane.b32.xlu0 %v775, 12
      %v1174 = vpop.permute.xlu0 %1173
      %1175 = vrot.lane.b32.xlu0 %v778, 12
      %v1176 = vpop.permute.xlu0 %1175
      %1177 = vrot.lane.b32.xlu0 %v790, 12
      %v1178 = vpop.permute.xlu0 %1177
      %1179 = vrot.lane.b32.xlu0 %v793, 12
      %v1180 = vpop.permute.xlu0 %1179
      %1181 = vrot.lane.b32.xlu0 %v805, 12
      %v1182 = vpop.permute.xlu0 %1181
      %1183 = vrot.lane.b32.xlu0 %v808, 12
      %v1184 = vpop.permute.xlu0 %1183
      %1185 = vrot.lane.b32.xlu0 %v820, 12
      %v1186 = vpop.permute.xlu0 %1185
      %1187 = vrot.lane.b32.xlu0 %v823, 12
      %v1188 = vpop.permute.xlu0 %1187
      %1189 = vrot.lane.b32.xlu0 %v835, 12
      %v1190 = vpop.permute.xlu0 %1189
      %1191 = vrot.lane.b32.xlu0 %v838, 12
      %v1192 = vpop.permute.xlu0 %1191
      %1193 = vrot.lane.b32.xlu0 %v850, 12
      %v1194 = vpop.permute.xlu0 %1193
      %1195 = vrot.lane.b32.xlu0 %v853, 12
      %v1196 = vpop.permute.xlu0 %1195
      %1197 = vrot.lane.b32.xlu0 %v865, 12
      %v1198 = vpop.permute.xlu0 %1197
      %1199 = vrot.lane.b32.xlu0 %v868, 12
      %v1200 = vpop.permute.xlu0 %1199
      %1201 = vrot.lane.b32.xlu0 %v880, 12
      %v1202 = vpop.permute.xlu0 %1201
      %1203 = vrot.lane.b32.xlu0 %v883, 12
      %v1204 = vpop.permute.xlu0 %1203
      %1205 = vrot.lane.b32.xlu0 %v895, 12
      %v1206 = vpop.permute.xlu0 %1205
      %1207 = vrot.lane.b32.xlu0 %v898, 12
      %v1208 = vpop.permute.xlu0 %1207
      %1209 = vrot.lane.b32.xlu0 %v1113, 12
      %v1210 = vpop.permute.xlu0 %1209
      %1211 = vrot.lane.b32.xlu0 %v1116, 12
      %v1212 = vpop.permute.xlu0 %1211
      %vm1213 = vcmask 31744
      %v1215 = vsel %vm1213, %v418, %v900
      %v1218 = vsel %vm1213, %v419, %v902
      %v1220 = vsel %vm1213, %v420, %v904
      %v1223 = vsel %vm1213, %v421, %v906
      %v1225 = vsel %vm1213, %v422, %v908
      %v1228 = vsel %vm1213, %v423, %v910
      %v1230 = vsel %vm1213, %v424, %v912
      %v1233 = vsel %vm1213, %v425, %v914
      %v1235 = vsel %vm1213, %v426, %v916
      %v1238 = vsel %vm1213, %v427, %v918
      %v1240 = vsel %vm1213, %v428, %v920
      %v1243 = vsel %vm1213, %v429, %v922
      %v1245 = vsel %vm1213, %v430, %v924
      %v1248 = vsel %vm1213, %v431, %v926
      %v1250 = vsel %vm1213, %v432, %v928
      %v1253 = vsel %vm1213, %v433, %v930
      %v1255 = vsel %vm1213, %v434, %v932
      %v1258 = vsel %vm1213, %v435, %v934
      %v1260 = vsel %vm1213, %v436, %v936
      %v1263 = vsel %vm1213, %v437, %v938
      %v1265 = vsel %vm1213, %v438, %v940
      %v1268 = vsel %vm1213, %v439, %v942
      %v1270 = vsel %vm1213, %v440, %v944
      %v1273 = vsel %vm1213, %v441, %v946
      %v1275 = vsel %vm1213, %v442, %v948
      %v1278 = vsel %vm1213, %v443, %v950
      %v1280 = vsel %vm1213, %v444, %v952
      %v1283 = vsel %vm1213, %v445, %v954
      %v1285 = vsel %vm1213, %v446, %v956
      %v1288 = vsel %vm1213, %v447, %v958
      %v1290 = vsel %vm1213, %v448, %v960
      %v1293 = vsel %vm1213, %v449, %v962
      %v1295 = vsel %vm1213, %v450, %v964
      %v1298 = vsel %vm1213, %v451, %v966
      %v1300 = vsel %vm1213, %v452, %v968
      %v1303 = vsel %vm1213, %v453, %v970
      %v1305 = vsel %vm1213, %v454, %v972
      %v1308 = vsel %vm1213, %v455, %v974
      %v1310 = vsel %vm1213, %v456, %v976
      %v1313 = vsel %vm1213, %v457, %v978
      %v1315 = vsel %vm1213, %v458, %v980
      %v1318 = vsel %vm1213, %v459, %v982
      %v1320 = vsel %vm1213, %v460, %v984
      %v1323 = vsel %vm1213, %v461, %v986
      %v1325 = vsel %vm1213, %v462, %v988
      %v1328 = vsel %vm1213, %v463, %v990
      %v1330 = vsel %vm1213, %v464, %v992
      %v1333 = vsel %vm1213, %v465, %v994
      %vm1334 = vcmask 64512
      %v1336 = vsel %vm1334, %v1215, %v1004
      %v1338 = vsel %vm1334, %v1218, %v1006
      %v1340 = vsel %vm1334, %v1220, %v1008
      %v1342 = vsel %vm1334, %v1223, %v1010
      %v1344 = vsel %vm1334, %v1225, %v1012
      %v1346 = vsel %vm1334, %v1228, %v1014
      %v1348 = vsel %vm1334, %v1230, %v1016
      %v1350 = vsel %vm1334, %v1233, %v1018
      %v1352 = vsel %vm1334, %v1235, %v1020
      %v1354 = vsel %vm1334, %v1238, %v1022
      %v1356 = vsel %vm1334, %v1240, %v1024
      %v1358 = vsel %vm1334, %v1243, %v1026
      %v1360 = vsel %vm1334, %v1245, %v1028
      %v1362 = vsel %vm1334, %v1248, %v1030
      %v1364 = vsel %vm1334, %v1250, %v1032
      %v1366 = vsel %vm1334, %v1253, %v1034
      %v1368 = vsel %vm1334, %v1255, %v1036
      %v1370 = vsel %vm1334, %v1258, %v1038
      %v1372 = vsel %vm1334, %v1260, %v1040
      %v1374 = vsel %vm1334, %v1263, %v1042
      %v1376 = vsel %vm1334, %v1265, %v1044
      %v1378 = vsel %vm1334, %v1268, %v1046
      %v1380 = vsel %vm1334, %v1270, %v1048
      %v1382 = vsel %vm1334, %v1273, %v1050
      %v1384 = vsel %vm1334, %v1275, %v1052
      %v1386 = vsel %vm1334, %v1278, %v1054
      %v1388 = vsel %vm1334, %v1280, %v1056
      %v1390 = vsel %vm1334, %v1283, %v1058
      %v1392 = vsel %vm1334, %v1285, %v1060
      %v1394 = vsel %vm1334, %v1288, %v1062
      %v1396 = vsel %vm1334, %v1290, %v1064
      %v1398 = vsel %vm1334, %v1293, %v1066
      %v1400 = vsel %vm1334, %v1295, %v1068
      %v1402 = vsel %vm1334, %v1298, %v1070
      %v1404 = vsel %vm1334, %v1300, %v1072
      %v1406 = vsel %vm1334, %v1303, %v1074
      %v1408 = vsel %vm1334, %v1305, %v1076
      %v1410 = vsel %vm1334, %v1308, %v1078
      %v1412 = vsel %vm1334, %v1310, %v1080
      %v1414 = vsel %vm1334, %v1313, %v1082
      %v1416 = vsel %vm1334, %v1315, %v1084
      %v1418 = vsel %vm1334, %v1318, %v1086
      %v1420 = vsel %vm1334, %v1320, %v1088
      %v1422 = vsel %vm1334, %v1323, %v1090
      %v1424 = vsel %vm1334, %v1325, %v1092
      %v1426 = vsel %vm1334, %v1328, %v1094
      %v1428 = vsel %vm1334, %v1330, %v1096
      %v1430 = vsel %vm1334, %v1333, %v1098
      %vm1431 = vcmask 97280
      %v1433 = vsel %vm1431, %v1336, %v1118
      %v1435 = vsel %vm1431, %v1338, %v1120
      %v1437 = vsel %vm1431, %v1340, %v1122
      %v1439 = vsel %vm1431, %v1342, %v1124
      %v1441 = vsel %vm1431, %v1344, %v1126
      %v1443 = vsel %vm1431, %v1346, %v1128
      %v1445 = vsel %vm1431, %v1348, %v1130
      %v1447 = vsel %vm1431, %v1350, %v1132
      %v1449 = vsel %vm1431, %v1352, %v1134
      %v1451 = vsel %vm1431, %v1354, %v1136
      %v1453 = vsel %vm1431, %v1356, %v1138
      %v1455 = vsel %vm1431, %v1358, %v1140
      %v1457 = vsel %vm1431, %v1360, %v1142
      %v1459 = vsel %vm1431, %v1362, %v1144
      %v1461 = vsel %vm1431, %v1364, %v1146
      %v1463 = vsel %vm1431, %v1366, %v1148
      %v1465 = vsel %vm1431, %v1368, %v1150
      %v1467 = vsel %vm1431, %v1370, %v1152
      %v1469 = vsel %vm1431, %v1372, %v1154
      %v1471 = vsel %vm1431, %v1374, %v1156
      %v1473 = vsel %vm1431, %v1376, %v1158
      %v1475 = vsel %vm1431, %v1378, %v1160
      %v1477 = vsel %vm1431, %v1380, %v1162
      %v1479 = vsel %vm1431, %v1382, %v1164
      %v1481 = vsel %vm1431, %v1384, %v1166
      %v1483 = vsel %vm1431, %v1386, %v1168
      %v1485 = vsel %vm1431, %v1388, %v1170
      %v1487 = vsel %vm1431, %v1390, %v1172
      %v1489 = vsel %vm1431, %v1392, %v1174
      %v1491 = vsel %vm1431, %v1394, %v1176
      %v1493 = vsel %vm1431, %v1396, %v1178
      %v1495 = vsel %vm1431, %v1398, %v1180
      %v1497 = vsel %vm1431, %v1400, %v1182
      %v1499 = vsel %vm1431, %v1402, %v1184
      %v1501 = vsel %vm1431, %v1404, %v1186
      %v1503 = vsel %vm1431, %v1406, %v1188
      %v1505 = vsel %vm1431, %v1408, %v1190
      %v1507 = vsel %vm1431, %v1410, %v1192
      %v1509 = vsel %vm1431, %v1412, %v1194
      %v1511 = vsel %vm1431, %v1414, %v1196
      %v1513 = vsel %vm1431, %v1416, %v1198
      %v1515 = vsel %vm1431, %v1418, %v1200
      %v1517 = vsel %vm1431, %v1420, %v1202
      %v1519 = vsel %vm1431, %v1422, %v1204
      %v1521 = vsel %vm1431, %v1424, %v1206
      %v1523 = vsel %vm1431, %v1426, %v1208
      %v1525 = vsel %vm1431, %v1428, %v1210
      %v1527 = vsel %vm1431, %v1430, %v1212
      %v1528 = vld [vmem:[%s1] sm:$0xf]
      %v1529 = vld [vmem:[%s1 + $0x4] sm:$0xf]
      %v1578 = vunpack.c.l.b16 %v1433
      %v1579 = vunpack.c.h.b16 %v1433
      %v1580 = vunpack.c.l.b16 %v1435
      %v1581 = vunpack.c.l.b16 %v1437
      %v1582 = vunpack.c.h.b16 %v1437
      %v1583 = vunpack.c.l.b16 %v1439
      %v1584 = vunpack.c.l.b16 %v1441
      %v1585 = vunpack.c.h.b16 %v1441
      %v1586 = vunpack.c.l.b16 %v1443
      %v1587 = vunpack.c.l.b16 %v1445
      %v1588 = vunpack.c.h.b16 %v1445
      %v1589 = vunpack.c.l.b16 %v1447
      %v1590 = vunpack.c.l.b16 %v1449
      %v1591 = vunpack.c.h.b16 %v1449
      %v1592 = vunpack.c.l.b16 %v1451
      %v1593 = vunpack.c.l.b16 %v1453
      %v1594 = vunpack.c.h.b16 %v1453
      %v1595 = vunpack.c.l.b16 %v1455
      %v1596 = vunpack.c.l.b16 %v1457
      %v1597 = vunpack.c.h.b16 %v1457
      %v1598 = vunpack.c.l.b16 %v1459
      %v1599 = vunpack.c.l.b16 %v1461
      %v1600 = vunpack.c.h.b16 %v1461
      %v1601 = vunpack.c.l.b16 %v1463
      %v1602 = vunpack.c.l.b16 %v1465
      %v1603 = vunpack.c.h.b16 %v1465
      %v1604 = vunpack.c.l.b16 %v1467
      %v1605 = vunpack.c.l.b16 %v1469
      %v1606 = vunpack.c.h.b16 %v1469
      %v1607 = vunpack.c.l.b16 %v1471
      %v1608 = vunpack.c.l.b16 %v1473
      %v1609 = vunpack.c.h.b16 %v1473
      %v1610 = vunpack.c.l.b16 %v1475
      %v1611 = vunpack.c.l.b16 %v1477
      %v1612 = vunpack.c.h.b16 %v1477
      %v1613 = vunpack.c.l.b16 %v1479
      %v1614 = vunpack.c.l.b16 %v1481
      %v1615 = vunpack.c.h.b16 %v1481
      %v1616 = vunpack.c.l.b16 %v1483
      %v1617 = vunpack.c.l.b16 %v1485
      %v1618 = vunpack.c.h.b16 %v1485
      %v1619 = vunpack.c.l.b16 %v1487
      %v1620 = vunpack.c.l.b16 %v1489
      %v1621 = vunpack.c.h.b16 %v1489
      %v1622 = vunpack.c.l.b16 %v1491
      %v1623 = vunpack.c.l.b16 %v1493
      %v1624 = vunpack.c.h.b16 %v1493
      %v1625 = vunpack.c.l.b16 %v1495
      %v1626 = vunpack.c.l.b16 %v1497
      %v1627 = vunpack.c.h.b16 %v1497
      %v1628 = vunpack.c.l.b16 %v1499
      %v1629 = vunpack.c.l.b16 %v1501
      %v1630 = vunpack.c.h.b16 %v1501
      %v1631 = vunpack.c.l.b16 %v1503
      %v1632 = vunpack.c.l.b16 %v1505
      %v1633 = vunpack.c.h.b16 %v1505
      %v1634 = vunpack.c.l.b16 %v1507
      %v1635 = vunpack.c.l.b16 %v1509
      %v1636 = vunpack.c.h.b16 %v1509
      %v1637 = vunpack.c.l.b16 %v1511
      %v1638 = vunpack.c.l.b16 %v1513
      %v1639 = vunpack.c.h.b16 %v1513
      %v1640 = vunpack.c.l.b16 %v1515
      %v1641 = vunpack.c.l.b16 %v1517
      %v1642 = vunpack.c.h.b16 %v1517
      %v1643 = vunpack.c.l.b16 %v1519
      %v1644 = vunpack.c.l.b16 %v1521
      %v1645 = vunpack.c.h.b16 %v1521
      %v1646 = vunpack.c.l.b16 %v1523
      %v1647 = vunpack.c.l.b16 %v1525
      %v1648 = vunpack.c.h.b16 %v1525
      %v1649 = vunpack.c.l.b16 %v1527
      %v1650 = vpack.c.b16 %v1579, %v1578
      %v1651 = vpack.c.b16 %v1581, %v1580
      %v1652 = vpack.c.b16 %v1583, %v1582
      %v1653 = vpack.c.b16 %v1585, %v1584
      %v1654 = vpack.c.b16 %v1587, %v1586
      %v1655 = vpack.c.b16 %v1589, %v1588
      %v1656 = vpack.c.b16 %v1591, %v1590
      %v1657 = vpack.c.b16 %v1593, %v1592
      %v1658 = vpack.c.b16 %v1595, %v1594
      %v1659 = vpack.c.b16 %v1597, %v1596
      %v1660 = vpack.c.b16 %v1599, %v1598
      %v1661 = vpack.c.b16 %v1601, %v1600
      %v1662 = vpack.c.b16 %v1603, %v1602
      %v1663 = vpack.c.b16 %v1605, %v1604
      %v1664 = vpack.c.b16 %v1607, %v1606
      %v1665 = vpack.c.b16 %v1609, %v1608
      %v1666 = vpack.c.b16 %v1611, %v1610
      %v1667 = vpack.c.b16 %v1613, %v1612
      %v1668 = vpack.c.b16 %v1615, %v1614
      %v1669 = vpack.c.b16 %v1617, %v1616
      %v1670 = vpack.c.b16 %v1619, %v1618
      %v1671 = vpack.c.b16 %v1621, %v1620
      %v1672 = vpack.c.b16 %v1623, %v1622
      %v1673 = vpack.c.b16 %v1625, %v1624
      %v1674 = vpack.c.b16 %v1627, %v1626
      %v1675 = vpack.c.b16 %v1629, %v1628
      %v1676 = vpack.c.b16 %v1631, %v1630
      %v1677 = vpack.c.b16 %v1633, %v1632
      %v1678 = vpack.c.b16 %v1635, %v1634
      %v1679 = vpack.c.b16 %v1637, %v1636
      %v1680 = vpack.c.b16 %v1639, %v1638
      %v1681 = vpack.c.b16 %v1641, %v1640
      %v1682 = vpack.c.b16 %v1643, %v1642
      %v1683 = vpack.c.b16 %v1645, %v1644
      %v1684 = vpack.c.b16 %v1647, %v1646
      %v1685 = vpack.c.b16 %v1649, %v1648
      %v1688 = vunpack.c.l.b16 %v1528
      %v1689 = vunpack.c.l.b16 %v1529
      %v1690 = vpack.c.b16 %v1689, %v1688
      %vm1692 = vcmask 130048
      %v1694 = vsel %vm1692, %v1650, 0
      %v1697 = vsel %vm1692, %v1651, 0
      %v1700 = vsel %vm1692, %v1652, 0
      %v1703 = vsel %vm1692, %v1653, 0
      %v1706 = vsel %vm1692, %v1654, 0
      %v1709 = vsel %vm1692, %v1655, 0
      %v1712 = vsel %vm1692, %v1656, 0
      %v1715 = vsel %vm1692, %v1657, 0
      %v1718 = vsel %vm1692, %v1658, 0
      %v1721 = vsel %vm1692, %v1659, 0
      %v1724 = vsel %vm1692, %v1660, 0
      %v1727 = vsel %vm1692, %v1661, 0
      %v1730 = vsel %vm1692, %v1662, 0
      %v1733 = vsel %vm1692, %v1663, 0
      %v1736 = vsel %vm1692, %v1664, 0
      %v1739 = vsel %vm1692, %v1665, 0
      %v1742 = vsel %vm1692, %v1666, 0
      %v1745 = vsel %vm1692, %v1667, 0
      %v1748 = vsel %vm1692, %v1668, 0
      %v1751 = vsel %vm1692, %v1669, 0
      %v1754 = vsel %vm1692, %v1670, 0
      %v1757 = vsel %vm1692, %v1671, 0
      %v1760 = vsel %vm1692, %v1672, 0
      %v1763 = vsel %vm1692, %v1673, 0
      %v1766 = vsel %vm1692, %v1674, 0
      %v1769 = vsel %vm1692, %v1675, 0
      %v1772 = vsel %vm1692, %v1676, 0
      %v1775 = vsel %vm1692, %v1677, 0
      %v1778 = vsel %vm1692, %v1678, 0
      %v1781 = vsel %vm1692, %v1679, 0
      %v1784 = vsel %vm1692, %v1680, 0
      %v1787 = vsel %vm1692, %v1681, 0
      %v1790 = vsel %vm1692, %v1682, 0
      %v1793 = vsel %vm1692, %v1683, 0
      %v1796 = vsel %vm1692, %v1684, 0
      %v1799 = vsel %vm1692, %v1685, 0
      %1801 = vmatpush.bf16.msra.mxu0 0
      %1802 = vmatpush.bf16.msra.mxu0 0
      %1803 = vmatpush.bf16.msra.mxu0 0
      %1804 = vmatpush.bf16.msra.mxu0 0
      %1805 = vmatpush.bf16.msra.mxu0 0
      %1806 = vmatpush.bf16.msra.mxu0 0
      %1807 = vmatpush.bf16.msra.mxu0 0
      %1808 = vmatpush.bf16.msra.mxu0 %v1690
      %1809 = vmatmul.bf16.gmra.mxu0 %v1694
      %v1810 = vpop.f32.mrf.mxu0
      %v1811 = vadd.f32 0.0, %v1810
      %v1812 = vpop.f32.mrf.mxu0
      %v1813 = vadd.f32 0.0, %v1812
      %1814 = vmatmul.bf16.gmra.mxu0 %v1697
      %v1815 = vpop.f32.mrf.mxu0
      %v1816 = vadd.f32 0.0, %v1815
      %v1817 = vpop.f32.mrf.mxu0
      %v1818 = vadd.f32 0.0, %v1817
      %1819 = vmatmul.bf16.gmra.mxu0 %v1700
      %v1820 = vpop.f32.mrf.mxu0
      %v1821 = vadd.f32 0.0, %v1820
      %v1822 = vpop.f32.mrf.mxu0
      %v1823 = vadd.f32 0.0, %v1822
      %1824 = vmatmul.bf16.gmra.mxu0 %v1703
      %v1825 = vpop.f32.mrf.mxu0
      %v1826 = vadd.f32 0.0, %v1825
      %v1827 = vpop.f32.mrf.mxu0
      %v1828 = vadd.f32 0.0, %v1827
      %1829 = vmatmul.bf16.gmra.mxu0 %v1706
      %v1830 = vpop.f32.mrf.mxu0
      %v1831 = vadd.f32 0.0, %v1830
      %v1832 = vpop.f32.mrf.mxu0
      %v1833 = vadd.f32 0.0, %v1832
      %1834 = vmatmul.bf16.gmra.mxu0 %v1709
      %v1835 = vpop.f32.mrf.mxu0
      %v1836 = vadd.f32 0.0, %v1835
      %v1837 = vpop.f32.mrf.mxu0
      %v1838 = vadd.f32 0.0, %v1837
      %1839 = vmatmul.bf16.gmra.mxu0 %v1712
      %v1840 = vpop.f32.mrf.mxu0
      %v1841 = vadd.f32 0.0, %v1840
      %v1842 = vpop.f32.mrf.mxu0
      %v1843 = vadd.f32 0.0, %v1842
      %1844 = vmatmul.bf16.gmra.mxu0 %v1715
      %v1845 = vpop.f32.mrf.mxu0
      %v1846 = vadd.f32 0.0, %v1845
      %v1847 = vpop.f32.mrf.mxu0
      %v1848 = vadd.f32 0.0, %v1847
      %1849 = vmatmul.bf16.gmra.mxu0 %v1718
      %v1850 = vpop.f32.mrf.mxu0
      %v1851 = vadd.f32 0.0, %v1850
      %v1852 = vpop.f32.mrf.mxu0
      %v1853 = vadd.f32 0.0, %v1852
      %1854 = vmatmul.bf16.gmra.mxu0 %v1721
      %v1855 = vpop.f32.mrf.mxu0
      %v1856 = vadd.f32 0.0, %v1855
      %v1857 = vpop.f32.mrf.mxu0
      %v1858 = vadd.f32 0.0, %v1857
      %1859 = vmatmul.bf16.gmra.mxu0 %v1724
      %v1860 = vpop.f32.mrf.mxu0
      %v1861 = vadd.f32 0.0, %v1860
      %v1862 = vpop.f32.mrf.mxu0
      %v1863 = vadd.f32 0.0, %v1862
      %1864 = vmatmul.bf16.gmra.mxu0 %v1727
      %v1865 = vpop.f32.mrf.mxu0
      %v1866 = vadd.f32 0.0, %v1865
      %v1867 = vpop.f32.mrf.mxu0
      %v1868 = vadd.f32 0.0, %v1867
      %1869 = vmatmul.bf16.gmra.mxu0 %v1730
      %v1870 = vpop.f32.mrf.mxu0
      %v1871 = vadd.f32 0.0, %v1870
      %v1872 = vpop.f32.mrf.mxu0
      %v1873 = vadd.f32 0.0, %v1872
      %1874 = vmatmul.bf16.gmra.mxu0 %v1733
      %v1875 = vpop.f32.mrf.mxu0
      %v1876 = vadd.f32 0.0, %v1875
      %v1877 = vpop.f32.mrf.mxu0
      %v1878 = vadd.f32 0.0, %v1877
      %1879 = vmatmul.bf16.gmra.mxu0 %v1736
      %v1880 = vpop.f32.mrf.mxu0
      %v1881 = vadd.f32 0.0, %v1880
      %v1882 = vpop.f32.mrf.mxu0
      %v1883 = vadd.f32 0.0, %v1882
      %1884 = vmatmul.bf16.gmra.mxu0 %v1739
      %v1885 = vpop.f32.mrf.mxu0
      %v1886 = vadd.f32 0.0, %v1885
      %v1887 = vpop.f32.mrf.mxu0
      %v1888 = vadd.f32 0.0, %v1887
      %1889 = vmatmul.bf16.gmra.mxu0 %v1742
      %v1890 = vpop.f32.mrf.mxu0
      %v1891 = vadd.f32 0.0, %v1890
      %v1892 = vpop.f32.mrf.mxu0
      %v1893 = vadd.f32 0.0, %v1892
      %1894 = vmatmul.bf16.gmra.mxu0 %v1745
      %v1895 = vpop.f32.mrf.mxu0
      %v1896 = vadd.f32 0.0, %v1895
      %v1897 = vpop.f32.mrf.mxu0
      %v1898 = vadd.f32 0.0, %v1897
      %1899 = vmatmul.bf16.gmra.mxu0 %v1748
      %v1900 = vpop.f32.mrf.mxu0
      %v1901 = vadd.f32 0.0, %v1900
      %v1902 = vpop.f32.mrf.mxu0
      %v1903 = vadd.f32 0.0, %v1902
      %1904 = vmatmul.bf16.gmra.mxu0 %v1751
      %v1905 = vpop.f32.mrf.mxu0
      %v1906 = vadd.f32 0.0, %v1905
      %v1907 = vpop.f32.mrf.mxu0
      %v1908 = vadd.f32 0.0, %v1907
      %1909 = vmatmul.bf16.gmra.mxu0 %v1754
      %v1910 = vpop.f32.mrf.mxu0
      %v1911 = vadd.f32 0.0, %v1910
      %v1912 = vpop.f32.mrf.mxu0
      %v1913 = vadd.f32 0.0, %v1912
      %1914 = vmatmul.bf16.gmra.mxu0 %v1757
      %v1915 = vpop.f32.mrf.mxu0
      %v1916 = vadd.f32 0.0, %v1915
      %v1917 = vpop.f32.mrf.mxu0
      %v1918 = vadd.f32 0.0, %v1917
      %1919 = vmatmul.bf16.gmra.mxu0 %v1760
      %v1920 = vpop.f32.mrf.mxu0
      %v1921 = vadd.f32 0.0, %v1920
      %v1922 = vpop.f32.mrf.mxu0
      %v1923 = vadd.f32 0.0, %v1922
      %1924 = vmatmul.bf16.gmra.mxu0 %v1763
      %v1925 = vpop.f32.mrf.mxu0
      %v1926 = vadd.f32 0.0, %v1925
      %v1927 = vpop.f32.mrf.mxu0
      %v1928 = vadd.f32 0.0, %v1927
      %1929 = vmatmul.bf16.gmra.mxu0 %v1766
      %v1930 = vpop.f32.mrf.mxu0
      %v1931 = vadd.f32 0.0, %v1930
      %v1932 = vpop.f32.mrf.mxu0
      %v1933 = vadd.f32 0.0, %v1932
      %1934 = vmatmul.bf16.gmra.mxu0 %v1769
      %v1935 = vpop.f32.mrf.mxu0
      %v1936 = vadd.f32 0.0, %v1935
      %v1937 = vpop.f32.mrf.mxu0
      %v1938 = vadd.f32 0.0, %v1937
      %1939 = vmatmul.bf16.gmra.mxu0 %v1772
      %v1940 = vpop.f32.mrf.mxu0
      %v1941 = vadd.f32 0.0, %v1940
      %v1942 = vpop.f32.mrf.mxu0
      %v1943 = vadd.f32 0.0, %v1942
      %1944 = vmatmul.bf16.gmra.mxu0 %v1775
      %v1945 = vpop.f32.mrf.mxu0
      %v1946 = vadd.f32 0.0, %v1945
      %v1947 = vpop.f32.mrf.mxu0
      %v1948 = vadd.f32 0.0, %v1947
      %1949 = vmatmul.bf16.gmra.mxu0 %v1778
      %v1950 = vpop.f32.mrf.mxu0
      %v1951 = vadd.f32 0.0, %v1950
      %v1952 = vpop.f32.mrf.mxu0
      %v1953 = vadd.f32 0.0, %v1952
      %1954 = vmatmul.bf16.gmra.mxu0 %v1781
      %v1955 = vpop.f32.mrf.mxu0
      %v1956 = vadd.f32 0.0, %v1955
      %v1957 = vpop.f32.mrf.mxu0
      %v1958 = vadd.f32 0.0, %v1957
      %1959 = vmatmul.bf16.gmra.mxu0 %v1784
      %v1960 = vpop.f32.mrf.mxu0
      %v1961 = vadd.f32 0.0, %v1960
      %v1962 = vpop.f32.mrf.mxu0
      %v1963 = vadd.f32 0.0, %v1962
      %1964 = vmatmul.bf16.gmra.mxu0 %v1787
      %v1965 = vpop.f32.mrf.mxu0
      %v1966 = vadd.f32 0.0, %v1965
      %v1967 = vpop.f32.mrf.mxu0
      %v1968 = vadd.f32 0.0, %v1967
      %1969 = vmatmul.bf16.gmra.mxu0 %v1790
      %v1970 = vpop.f32.mrf.mxu0
      %v1971 = vadd.f32 0.0, %v1970
      %v1972 = vpop.f32.mrf.mxu0
      %v1973 = vadd.f32 0.0, %v1972
      %1974 = vmatmul.bf16.gmra.mxu0 %v1793
      %v1975 = vpop.f32.mrf.mxu0
      %v1976 = vadd.f32 0.0, %v1975
      %v1977 = vpop.f32.mrf.mxu0
      %v1978 = vadd.f32 0.0, %v1977
      %1979 = vmatmul.bf16.gmra.mxu0 %v1796
      %v1980 = vpop.f32.mrf.mxu0
      %v1981 = vadd.f32 0.0, %v1980
      %v1982 = vpop.f32.mrf.mxu0
      %v1983 = vadd.f32 0.0, %v1982
      %1984 = vmatmul.bf16.gmra.mxu0 %v1799
      %v1985 = vpop.f32.mrf.mxu0
      %v1986 = vadd.f32 0.0, %v1985
      %v1987 = vpop.f32.mrf.mxu0
      %v1988 = vadd.f32 0.0, %v1987
      %1989 = vdwg.mxu0
      %1990 = vst [vmem:[%s167] sm:$0xff] %v1811
      %1991 = vst [vmem:[%s167 + $0x8] sm:$0xff] %v1813
      %1992 = vst [vmem:[%s167 + $0x10] sm:$0xff] %v1816
      %1993 = vst [vmem:[%s167 + $0x18] sm:$0xff] %v1818
      %1994 = vst [vmem:[%s167 + $0x20] sm:$0xff] %v1821
      %1995 = vst [vmem:[%s167 + $0x28] sm:$0xff] %v1823
      %1996 = vst [vmem:[%s167 + $0x30] sm:$0xff] %v1826
      %1997 = vst [vmem:[%s167 + $0x38] sm:$0xff] %v1828
      %1998 = vst [vmem:[%s167 + $0x40] sm:$0xff] %v1831
      %1999 = vst [vmem:[%s167 + $0x48] sm:$0xff] %v1833
      %2000 = vst [vmem:[%s167 + $0x50] sm:$0xff] %v1836
      %2001 = vst [vmem:[%s167 + $0x58] sm:$0xff] %v1838
      %2002 = vst [vmem:[%s167 + $0x60] sm:$0xff] %v1841
      %2003 = vst [vmem:[%s167 + $0x68] sm:$0xff] %v1843
      %2004 = vst [vmem:[%s167 + $0x70] sm:$0xff] %v1846
      %2005 = vst [vmem:[%s167 + $0x78] sm:$0xff] %v1848
      %2006 = vst [vmem:[%s167 + $0x80] sm:$0xff] %v1851
      %2007 = vst [vmem:[%s167 + $0x88] sm:$0xff] %v1853
      %2008 = vst [vmem:[%s167 + $0x90] sm:$0xff] %v1856
      %2009 = vst [vmem:[%s167 + $0x98] sm:$0xff] %v1858
      %2010 = vst [vmem:[%s167 + $0xa0] sm:$0xff] %v1861
      %2011 = vst [vmem:[%s167 + $0xa8] sm:$0xff] %v1863
      %2012 = vst [vmem:[%s167 + $0xb0] sm:$0xff] %v1866
      %2013 = vst [vmem:[%s167 + $0xb8] sm:$0xff] %v1868
      %2014 = vst [vmem:[%s167 + $0xc0] sm:$0xff] %v1871
      %2015 = vst [vmem:[%s167 + $0xc8] sm:$0xff] %v1873
      %2016 = vst [vmem:[%s167 + $0xd0] sm:$0xff] %v1876
      %2017 = vst [vmem:[%s167 + $0xd8] sm:$0xff] %v1878
      %2018 = vst [vmem:[%s167 + $0xe0] sm:$0xff] %v1881
      %2019 = vst [vmem:[%s167 + $0xe8] sm:$0xff] %v1883
      %2020 = vst [vmem:[%s167 + $0xf0] sm:$0xff] %v1886
      %2021 = vst [vmem:[%s167 + $0xf8] sm:$0xff] %v1888
      %2022 = vst [vmem:[%s167 + $0x100] sm:$0xff] %v1891
      %2023 = vst [vmem:[%s167 + $0x108] sm:$0xff] %v1893
      %2024 = vst [vmem:[%s167 + $0x110] sm:$0xff] %v1896
      %2025 = vst [vmem:[%s167 + $0x118] sm:$0xff] %v1898
      %2026 = vst [vmem:[%s167 + $0x120] sm:$0xff] %v1901
      %2027 = vst [vmem:[%s167 + $0x128] sm:$0xff] %v1903
      %2028 = vst [vmem:[%s167 + $0x130] sm:$0xff] %v1906
      %2029 = vst [vmem:[%s167 + $0x138] sm:$0xff] %v1908
      %2030 = vst [vmem:[%s167 + $0x140] sm:$0xff] %v1911
      %2031 = vst [vmem:[%s167 + $0x148] sm:$0xff] %v1913
      %2032 = vst [vmem:[%s167 + $0x150] sm:$0xff] %v1916
      %2033 = vst [vmem:[%s167 + $0x158] sm:$0xff] %v1918
      %2034 = vst [vmem:[%s167 + $0x160] sm:$0xff] %v1921
      %2035 = vst [vmem:[%s167 + $0x168] sm:$0xff] %v1923
      %2036 = vst [vmem:[%s167 + $0x170] sm:$0xff] %v1926
      %2037 = vst [vmem:[%s167 + $0x178] sm:$0xff] %v1928
      %2038 = vst [vmem:[%s167 + $0x180] sm:$0xff] %v1931
      %2039 = vst [vmem:[%s167 + $0x188] sm:$0xff] %v1933
      %2040 = vst [vmem:[%s167 + $0x190] sm:$0xff] %v1936
      %2041 = vst [vmem:[%s167 + $0x198] sm:$0xff] %v1938
      %2042 = vst [vmem:[%s167 + $0x1a0] sm:$0xff] %v1941
      %2043 = vst [vmem:[%s167 + $0x1a8] sm:$0xff] %v1943
      %2044 = vst [vmem:[%s167 + $0x1b0] sm:$0xff] %v1946
      %2045 = vst [vmem:[%s167 + $0x1b8] sm:$0xff] %v1948
      %2046 = vst [vmem:[%s167 + $0x1c0] sm:$0xff] %v1951
      %2047 = vst [vmem:[%s167 + $0x1c8] sm:$0xff] %v1953
      %2048 = vst [vmem:[%s167 + $0x1d0] sm:$0xff] %v1956
      %2049 = vst [vmem:[%s167 + $0x1d8] sm:$0xff] %v1958
      %2050 = vst [vmem:[%s167 + $0x1e0] sm:$0xff] %v1961
      %2051 = vst [vmem:[%s167 + $0x1e8] sm:$0xff] %v1963
      %2052 = vst [vmem:[%s167 + $0x1f0] sm:$0xff] %v1966
      %2053 = vst [vmem:[%s167 + $0x1f8] sm:$0xff] %v1968
      %2054 = vst [vmem:[%s167 + $0x200] sm:$0xff] %v1971
      %2055 = vst [vmem:[%s167 + $0x208] sm:$0xff] %v1973
      %2056 = vst [vmem:[%s167 + $0x210] sm:$0xff] %v1976
      %2057 = vst [vmem:[%s167 + $0x218] sm:$0xff] %v1978
      %2058 = vst [vmem:[%s167 + $0x220] sm:$0xff] %v1981
      %2059 = vst [vmem:[%s167 + $0x228] sm:$0xff] %v1983
      %2060 = vst [vmem:[%s167 + $0x230] sm:$0xff] %v1986
      %2061 = vst [vmem:[%s167 + $0x238] sm:$0xff] %v1988
      %s2062 = smul.u32 24, %s18
      %p2063 = scmp.lt.s32.totalorder %s17, 1
      %s2064 = scalar_select %p2063, %s17, 1
      %p2065 = scmp.lt.s32.totalorder %s2062, 23
      %s2066 = scalar_select %p2065, %s2062, 23
      %s2067 = smul.addr %s2066, 3
      %s2068 = smul.addr %s2064, 72
      %s2069 = sadd.s32 %s2067, %s2068
      %s2070 = smul.addr %s2069, 8
      %s2071 = scalar_lea.vmem %s2, %s2070
      // Predicated region
      $region29: #{_conv_transpose2d_impl.1} parent=27 // pred_check
        %p2072 = pneg %p92
      $region30: #{_conv_transpose2d_impl.1} parent=27 // pred_check_branch
        %2074 = sbr.rel (%p2072) target = $region32
      $region31: #{_conv_transpose2d_impl.1} parent=27 // pred_region
        %s2075 = smul.u32 24, %s18
      $region32: #{_conv_transpose2d_impl.1} parent=27 // pred_fallthru
        _
    $region28: #{_conv_transpose2d_impl.1} parent=5 // pred_fallthru
      _
    %p2076 = scmp.le.s32.totalorder 2, %s8
    // Predicated region
    $region33: #{_conv_transpose2d_impl.1} parent=5 // pred_check
      %p2077 = pneg %p2076
    $region34: #{_conv_transpose2d_impl.1} parent=5 // pred_check_branch
      %2079 = sbr.rel (%p2077) target = $region36
    $region35: #{_conv_transpose2d_impl.1} parent=5 // pred_region
      %s2080 = ssub.s32 %s8, 2
      // Predicated region
      $region37: #{_conv_transpose2d_impl.1} parent=35 // pred_check
        %p2081 = pneg %p98
      $region38: #{_conv_transpose2d_impl.1} parent=35 // pred_check_branch
        %2083 = sbr.rel (%p2081) target = $region40
      $region39: #{_conv_transpose2d_impl.1} parent=35 // pred_region
        %s2084 = smul.u32 24, %s20
        %p2085 = scmp.lt.s32.totalorder %s19, 1
        %s2086 = scalar_select %p2085, %s19, 1
        %p2087 = scmp.lt.s32.totalorder %s2084, 23
        %s2088 = scalar_select %p2087, %s2084, 23
        %s2089 = smul.addr %s2088, 3
        %s2090 = smul.addr %s2086, 72
        %s2091 = sadd.s32 %s2089, %s2090
        %s2092 = smul.addr %s2091, 8
        %s2093 = scalar_lea.vmem %s2, %s2092
      $region40: #{_conv_transpose2d_impl.1} parent=35 // pred_fallthru
        _
    $region36: #{_conv_transpose2d_impl.1} parent=5 // pred_fallthru
      _
  $region6: #{_conv_transpose2d_impl.1} parent=0 // loop_footer
    %s12 = sadd.s32 1, %s8
  $region7: #{_conv_transpose2d_impl.1} parent=0 // loop_footer_branch
    %7 = sbr.rel target = $region3
  $region8: #{_conv_transpose2d_impl.1} parent=0 // loop_exit
    _

</llo_original>
